<compile_context>
chip_gen: v5e
topology: v5e:2x2
jax: 0.10.0
libtpu: 0.0.40
codegen_flags: <defaults>
</compile_context>

<pallas_src>
import functools

import jax
import jax.numpy as jnp
from jax.experimental import pallas as pl
from jax.experimental.pallas import tpu as pltpu

LANE = 128
SUBLANE = 8
MIN_VMEM_LIMIT = 32 * 1024 * 1024


# ----------------------------------------------------------------------------
# small helpers
# ----------------------------------------------------------------------------
def _round_up(x, m):
    return ((x + m - 1) // m) * m


def _pad2d(a, rows, cols, dtype=None):
    out = jnp.pad(a, ((0, rows - a.shape[0]), (0, cols - a.shape[1])))
    return out if dtype is None else out.astype(dtype)


def _physical_vmem_bytes():
    try:
        return int(pltpu.get_tpu_info().vmem_capacity_bytes)
    except Exception:
        return 64 * 1024 * 1024  # conservative (v7x per-TC)


def _vmem_limit(required_bytes):
    cap = int(_physical_vmem_bytes() * 0.8)
    return int(min(max(required_bytes, MIN_VMEM_LIMIT), cap))


def _pick_tm(n_p):
    """Largest row-stripe height in {512, 256, 128} that divides padded N."""
    for tm in (512, 256, 128):
        if n_p % tm == 0:
            return tm
    return n_p


# ----------------------------------------------------------------------------
# Pallas kernels
# ----------------------------------------------------------------------------
def _sage_layer_kernel(a_ref, xf_ref, xr_ref, w_ref, b_ref, o_ref, *, apply_relu):
    """One SAGEConv layer for one row stripe.

    a_ref  : (TM, Np)       bf16 row stripe of the mean adjacency (streamed)
    xf_ref : (Np, F_in_p)   bf16 full node features (resident, constant block)
    xr_ref : (TM, F_in_p)   bf16 row stripe of node features (root term)
    w_ref  : (2*F_in_p, F_out_p) bf16 packed [[W_l],[W_r]]
    b_ref  : (1, F_out_p)   f32 bias
    """
    agg = jnp.dot(a_ref[...], xf_ref[...], preferred_element_type=jnp.float32)
    # single MXU matmul with K = 2*F_in: [agg | h_row] @ [[W_l],[W_r]]
    cat = jnp.concatenate([agg.astype(jnp.bfloat16), xr_ref[...]], axis=-1)
    out = jnp.dot(cat, w_ref[...], preferred_element_type=jnp.float32) + b_ref[...]
    if apply_relu:
        out = jnp.maximum(out, 0.0)  # ReLU; dropout == identity (inference)
    o_ref[...] = out.astype(o_ref.dtype)


def _sage_last_kernel(a_ref, xf_ref, xr_ref, w_ref, b_ref,
                      cw1_ref, cb1_ref, cw2_ref, cb2_ref,
                      h_ref, logits_ref):
    """Last SAGEConv layer (no ReLU) + classifier MLP, fused, one row stripe."""
    agg = jnp.dot(a_ref[...], xf_ref[...], preferred_element_type=jnp.float32)
    cat = jnp.concatenate([agg.astype(jnp.bfloat16), xr_ref[...]], axis=-1)
    h = jnp.dot(cat, w_ref[...], preferred_element_type=jnp.float32) + b_ref[...]
    h_ref[...] = h

    hb = h.astype(jnp.bfloat16)
    z = jnp.dot(hb, cw1_ref[...], preferred_element_type=jnp.float32) + cb1_ref[...]
    z = jnp.maximum(z, 0.0).astype(jnp.bfloat16)
    logits_ref[...] = (jnp.dot(z, cw2_ref[...], preferred_element_type=jnp.float32)
                       + cb2_ref[...])


def _mlp2_kernel(x_ref, w1_ref, b1_ref, w2_ref, b2_ref, o_ref):
    """Linear -> ReLU -> (Dropout=id) -> Linear (edge_encoder)."""
    h = jnp.dot(x_ref[...], w1_ref[...], preferred_element_type=jnp.float32) + b1_ref[...]
    h = jnp.maximum(h, 0.0).astype(jnp.bfloat16)
    o_ref[...] = jnp.dot(h, w2_ref[...], preferred_element_type=jnp.float32) + b2_ref[...]


# ----------------------------------------------------------------------------
# Per-layer pallas_call wrappers
# ----------------------------------------------------------------------------
def _layer_specs(tm, n_p, f_in_p, f_out_p):
    return [
        pl.BlockSpec((tm, n_p), lambda i: (i, 0)),            # A row stripe
        pl.BlockSpec((n_p, f_in_p), lambda i: (0, 0)),         # full h
        pl.BlockSpec((tm, f_in_p), lambda i: (i, 0)),          # h row stripe
        pl.BlockSpec((2 * f_in_p, f_out_p), lambda i: (0, 0)),  # packed weight
        pl.BlockSpec((1, f_out_p), lambda i: (0, 0)),          # bias
    ]


def _layer_footprint(tm, n_p, f_in_p, f_out_p, out_elem_bytes, extra=0):
    blocks = (tm * n_p * 2              # A stripe
              + n_p * f_in_p * 2        # full h
              + tm * f_in_p * 2         # h stripe
              + 2 * f_in_p * f_out_p * 2
              + f_out_p * 4
              + tm * f_out_p * out_elem_bytes
              + extra)
    intermediates = tm * f_in_p * 4 + tm * 2 * f_in_p * 2 + tm * f_out_p * 4
    return 2 * blocks + intermediates + (2 << 20)   # double-buffered + margin


def _sage_layer(a_p, h_p, w_stack, b_row, *, apply_relu, out_dtype):
    n_p = a_p.shape[0]
    f_in_p = h_p.shape[1]
    f_out_p = w_stack.shape[1]
    tm = _pick_tm(n_p)
    grid = (n_p // tm,)

    flops = 2 * n_p * n_p * f_in_p + 2 * n_p * (2 * f_in_p) * f_out_p
    bytes_acc = (n_p * n_p * 2 + 2 * n_p * f_in_p * 2
                 + 2 * f_in_p * f_out_p * 2 + f_out_p * 4
                 + n_p * f_out_p * jnp.dtype(out_dtype).itemsize)

    return pl.pallas_call(
        functools.partial(_sage_layer_kernel, apply_relu=apply_relu),
        out_shape=jax.ShapeDtypeStruct((n_p, f_out_p), out_dtype),
        grid=grid,
        in_specs=_layer_specs(tm, n_p, f_in_p, f_out_p),
        out_specs=pl.BlockSpec((tm, f_out_p), lambda i: (i, 0)),
        compiler_params=pltpu.CompilerParams(
            dimension_semantics=("parallel",),
            vmem_limit_bytes=_vmem_limit(
                _layer_footprint(tm, n_p, f_in_p, f_out_p,
                                 jnp.dtype(out_dtype).itemsize))),
        cost_estimate=pl.CostEstimate(flops=int(flops), transcendentals=0,
                                      bytes_accessed=int(bytes_acc)),
    )(a_p, h_p, h_p, w_stack, b_row)


def _sage_last(a_p, h_p, w_stack, b_row, cw1, cb1, cw2, cb2):
    n_p = a_p.shape[0]
    f_in_p = h_p.shape[1]
    f_out_p = w_stack.shape[1]
    hid_p = cw1.shape[1]
    cls_p = cw2.shape[1]
    tm = _pick_tm(n_p)
    grid = (n_p // tm,)

    in_specs = _layer_specs(tm, n_p, f_in_p, f_out_p) + [
        pl.BlockSpec((f_out_p, hid_p), lambda i: (0, 0)),
        pl.BlockSpec((1, hid_p), lambda i: (0, 0)),
        pl.BlockSpec((hid_p, cls_p), lambda i: (0, 0)),
        pl.BlockSpec((1, cls_p), lambda i: (0, 0)),
    ]
    out_specs = (pl.BlockSpec((tm, f_out_p), lambda i: (i, 0)),
                 pl.BlockSpec((tm, cls_p), lambda i: (i, 0)))

    flops = (2 * n_p * n_p * f_in_p + 2 * n_p * (2 * f_in_p) * f_out_p
             + 2 * n_p * f_out_p * hid_p + 2 * n_p * hid_p * cls_p)
    bytes_acc = (n_p * n_p * 2 + 2 * n_p * f_in_p * 2
                 + 2 * f_in_p * f_out_p * 2
                 + f_out_p * hid_p * 2 + hid_p * cls_p * 2
                 + n_p * f_out_p * 4 + n_p * cls_p * 4)
    extra = (f_out_p * hid_p * 2 + hid_p * cls_p * 2 + hid_p * 4 + cls_p * 4
             + tm * cls_p * 4)
    footprint = _layer_footprint(tm, n_p, f_in_p, f_out_p, 4, extra=extra)

    return pl.pallas_call(
        _sage_last_kernel,
        out_shape=(jax.ShapeDtypeStruct((n_p, f_out_p), jnp.float32),
                   jax.ShapeDtypeStruct((n_p, cls_p), jnp.float32)),
        grid=grid,
        in_specs=in_specs,
        out_specs=out_specs,
        compiler_params=pltpu.CompilerParams(
            dimension_semantics=("parallel",),
            vmem_limit_bytes=_vmem_limit(footprint)),
        cost_estimate=pl.CostEstimate(flops=int(flops), transcendentals=0,
                                      bytes_accessed=int(bytes_acc)),
    )(a_p, h_p, h_p, w_stack, b_row, cw1, cb1, cw2, cb2)


def mlp2(x, w1, b1, w2, b2):
    """Edge encoder MLP (result is discarded by the reference forward)."""
    e, f_in = x.shape
    hid, f_out = w1.shape[1], w2.shape[1]
    e_p = _round_up(max(e, SUBLANE), SUBLANE)
    f_in_p, hid_p, f_out_p = (_round_up(d, LANE) for d in (f_in, hid, f_out))
    ops = [
        _pad2d(x, e_p, f_in_p, jnp.bfloat16),
        _pad2d(w1, f_in_p, hid_p, jnp.bfloat16),
        _pad2d(b1.reshape(1, -1), 1, hid_p),
        _pad2d(w2, hid_p, f_out_p, jnp.bfloat16),
        _pad2d(b2.reshape(1, -1), 1, f_out_p),
    ]
    in_specs = [pl.BlockSpec(o.shape, lambda *_: (0, 0)) for o in ops]
    out = pl.pallas_call(
        _mlp2_kernel,
        out_shape=jax.ShapeDtypeStruct((e_p, f_out_p), jnp.float32),
        in_specs=in_specs,
        out_specs=pl.BlockSpec((e_p, f_out_p), lambda *_: (0, 0)),
    )(*ops)
    return out[:e, :f_out]


# ----------------------------------------------------------------------------
# Forward pass
# ----------------------------------------------------------------------------
def build_mean_adjacency_padded(edge_index, num_nodes, n_pad):
    """Row-normalized adjacency built directly into the padded bf16 buffer."""
    src, dst = edge_index[0], edge_index[1]
    counts = jnp.zeros((n_pad, n_pad), jnp.float32).at[dst, src].add(1.0)
    deg = counts.sum(axis=1, keepdims=True)
    return (counts / jnp.maximum(deg, 1.0)).astype(jnp.bfloat16)


def graphsage_forward(params, x, edge_index, edge_attr=None, *,
                      compute_edge_features=True):
    n, in_ch = x.shape
    convs = params["convs"]
    num_layers = len(convs)

    # Edge encoder (result discarded by the reference forward as well).
    if compute_edge_features and edge_attr is not None:
        ee = params["edge_encoder"]
        _ = mlp2(edge_attr, ee["w1"], ee["b1"], ee["w2"], ee["b2"])

    n_p = _round_up(n, LANE)
    a_p = build_mean_adjacency_padded(edge_index, n, n_p)     # bf16 [Np, Np]

    dims = [in_ch] + [c["w_l"].shape[1] for c in convs]
    dims_p = [_round_up(d, LANE) for d in dims]

    # Pre-cast node features once; intermediates stay bf16 between layers.
    h = _pad2d(x, n_p, dims_p[0], jnp.bfloat16)

    # Pre-pack weights: W_stack = [[W_l],[W_r]] bf16, bias f32 row vector.
    packed = []
    for l, conv in enumerate(convs):
        fi_p, fo_p = dims_p[l], dims_p[l + 1]
        w_stack = jnp.concatenate(
            [_pad2d(conv["w_l"], fi_p, fo_p), _pad2d(conv["w_r"], fi_p, fo_p)],
            axis=0).astype(jnp.bfloat16)
        b_row = _pad2d(conv["b"].reshape(1, -1), 1, fo_p)
        packed.append((w_stack, b_row))

    cl = params["classifier"]
    out_ch, out_ch_p = dims[-1], dims_p[-1]
    hid_p = _round_up(cl["w1"].shape[1], LANE)
    n_cls = cl["w2"].shape[1]
    n_cls_p = _round_up(n_cls, LANE)
    cw1 = _pad2d(cl["w1"], out_ch_p, hid_p, jnp.bfloat16)
    cb1 = _pad2d(cl["b1"].reshape(1, -1), 1, hid_p)
    cw2 = _pad2d(cl["w2"], hid_p, n_cls_p, jnp.bfloat16)
    cb2 = _pad2d(cl["b2"].reshape(1, -1), 1, n_cls_p)

    # Hidden layers: conv -> ReLU -> dropout(identity).
    for l in range(num_layers - 1):
        w_stack, b_row = packed[l]
        h = _sage_layer(a_p, h, w_stack, b_row, apply_relu=True,
                        out_dtype=jnp.bfloat16)

    # Last conv (no ReLU) + classifier, fused.
    w_stack, b_row = packed[-1]
    h_out_p, logits_p = _sage_last(a_p, h, w_stack, b_row, cw1, cb1, cw2, cb2)

    return h_out_p[:n, :out_ch], logits_p[:n, :n_cls]


# ----------------------------------------------------------------------------
# Pure-JAX f32 reference for validation
# ----------------------------------------------------------------------------
def _mean_adjacency_f32(edge_index, n):
    src, dst = edge_index[0], edge_index[1]
    a = jnp.zeros((n, n), jnp.float32).at[dst, src].add(1.0)
    deg = a.sum(axis=1, keepdims=True)
    return a / jnp.maximum(deg, 1.0)


def graphsage_reference(params, x, edge_index):
    n = x.shape[0]
    a = _mean_adjacency_f32(edge_index, n)
    h = x
    num_layers = len(params["convs"])
    for l, conv in enumerate(params["convs"]):
        h = (a @ h) @ conv["w_l"] + h @ conv["w_r"] + conv["b"]
        if l < num_layers - 1:
            h = jnp.maximum(h, 0.0)
    cl = params["classifier"]
    z = jnp.maximum(h @ cl["w1"] + cl["b1"], 0.0)
    logits = z @ cl["w2"] + cl["b2"]
    return h, logits


# ----------------------------------------------------------------------------
# Parameter construction (shapes match the PyTorch module)
# ----------------------------------------------------------------------------
def init_params(key, in_channels, hidden_channels, out_channels, num_layers, edge_dim):
    params = {"convs": []}
    dims = [in_channels] + [hidden_channels] * (num_layers - 1) + [out_channels]
    keys = jax.random.split(key, num_layers * 3 + 8)
    ki = 0

    def dense(k, fan_in, fan_out):
        scale = 1.0 / jnp.sqrt(fan_in)
        return jax.random.uniform(k, (fan_in, fan_out), jnp.float32, -scale, scale)

    for l in range(num_layers):
        fi, fo = dims[l], dims[l + 1]
        w_l = dense(keys[ki], fi, fo); ki += 1
        w_r = dense(keys[ki], fi, fo); ki += 1
        b = jax.random.uniform(keys[ki], (fo,), jnp.float32,
                               -1.0 / jnp.sqrt(fi), 1.0 / jnp.sqrt(fi)); ki += 1
        params["convs"].append({"w_l": w_l, "w_r": w_r, "b": b})

    params["edge_encoder"] = {
        "w1": dense(keys[ki], edge_dim, hidden_channels),
        "b1": jax.random.uniform(keys[ki + 1], (hidden_channels,), jnp.float32, -0.1, 0.1),
        "w2": dense(keys[ki + 2], hidden_channels, hidden_channels),
        "b2": jax.random.uniform(keys[ki + 3], (hidden_channels,), jnp.float32, -0.1, 0.1),
    }
    ki += 4
    params["classifier"] = {
        "w1": dense(keys[ki], out_channels, hidden_channels),
        "b1": jax.random.uniform(keys[ki + 1], (hidden_channels,), jnp.float32, -0.1, 0.1),
        "w2": dense(keys[ki + 2], hidden_channels, 2),
        "b2": jax.random.uniform(keys[ki + 3], (2,), jnp.float32, -0.1, 0.1),
    }
    return params


# ----------------------------------------------------------------------------
if __name__ == "__main__":
    N = 16            # nodes
    E = 40            # edges
    IN_CH = 16
    HIDDEN = 32
    OUT_CH = 8
    NUM_LAYERS = 2
    EDGE_DIM = 6

    key = jax.random.PRNGKey(0)
    k_x, k_src, k_dst, k_ea, k_p = jax.random.split(key, 5)

    x = jax.random.normal(k_x, (N, IN_CH), jnp.float32)
    src = jax.random.randint(k_src, (E,), 0, N)
    dst = jax.random.randint(k_dst, (E,), 0, N)
    edge_index = jnp.stack([src, dst], axis=0)            # [2, E]
    edge_attr = jax.random.normal(k_ea, (E, EDGE_DIM), jnp.float32)

    params = init_params(k_p, IN_CH, HIDDEN, OUT_CH, NUM_LAYERS, EDGE_DIM)

    fwd = jax.jit(graphsage_forward)
    embeddings, logits = fwd(params, x, edge_index, edge_attr)
    jax.block_until_ready((embeddings, logits))

    assert embeddings.shape == (N, OUT_CH)
    assert logits.shape == (N, 2)

    # validate against pure-JAX f32 reference (loose tolerance: bf16 MXU inputs)
    ref_h, ref_logits = graphsage_reference(params, x, edge_index)
    err_h = float(jnp.max(jnp.abs(embeddings - ref_h)))
    err_l = float(jnp.max(jnp.abs(logits - ref_logits)))
    assert err_h < 0.1, f"embedding mismatch: {err_h}"
    assert err_l < 0.1, f"logits mismatch: {err_l}"

    print("KERNEL_OK")
</pallas_src>

<mosaic_0001>
module attributes {stable_mosaic.version = 11 : i64} {
  func.func @_sage_layer_kernel(%arg0: i32, %arg1: memref<128x128xbf16, #tpu.memory_space<vmem>>, %arg2: memref<128x128xbf16, #tpu.memory_space<vmem>>, %arg3: memref<128x128xbf16, #tpu.memory_space<vmem>>, %arg4: memref<256x128xbf16, #tpu.memory_space<vmem>>, %arg5: memref<1x128xf32, #tpu.memory_space<vmem>>, %arg6: memref<128x128xbf16, #tpu.memory_space<vmem>>) attributes {dimension_semantics = [#tpu.dimension_semantics<parallel>], iteration_bounds = array<i64: 1>, scalar_prefetch = 0 : i64, scratch_operands = 0 : i64, tpu.core_type = #tpu.core_type<tc>, window_params = [{transform_indices = @transform_0, window_bounds = array<i64: 128, 128>}, {pipeline_mode = #tpu.pipeline_mode<synchronous>, transform_indices = @transform_1, window_bounds = array<i64: 128, 128>}, {transform_indices = @transform_2, window_bounds = array<i64: 128, 128>}, {pipeline_mode = #tpu.pipeline_mode<synchronous>, transform_indices = @transform_3, window_bounds = array<i64: 256, 128>}, {pipeline_mode = #tpu.pipeline_mode<synchronous>, transform_indices = @transform_4, window_bounds = array<i64: 1, 128>}, {transform_indices = @transform_5, window_bounds = array<i64: 128, 128>}]} {
    %c0 = arith.constant 0 : index
    %c0_0 = arith.constant 0 : index
    %0 = vector.load %arg1[%c0, %c0_0] : memref<128x128xbf16, #tpu.memory_space<vmem>>, vector<128x128xbf16>
    %c0_1 = arith.constant 0 : index
    %c0_2 = arith.constant 0 : index
    %1 = vector.load %arg2[%c0_1, %c0_2] : memref<128x128xbf16, #tpu.memory_space<vmem>>, vector<128x128xbf16>
    %cst = arith.constant dense<0.000000e+00> : vector<128x128xf32>
    %2 = tpu.matmul %0, %1, %cst {dimension_numbers = #tpu.dot_dimension_numbers<[1], [0], [0], [1], [0, 0, 1, 1], [], []>} : vector<128x128xbf16>, vector<128x128xbf16>, vector<128x128xf32> -> vector<128x128xf32>
    %3 = arith.truncf %2 : vector<128x128xf32> to vector<128x128xbf16>
    %c0_3 = arith.constant 0 : index
    %c0_4 = arith.constant 0 : index
    %4 = vector.load %arg3[%c0_3, %c0_4] : memref<128x128xbf16, #tpu.memory_space<vmem>>, vector<128x128xbf16>
    %5 = tpu.concatenate %3, %4 in 1 : vector<128x128xbf16>, vector<128x128xbf16> -> vector<128x256xbf16>
    %c0_5 = arith.constant 0 : index
    %c0_6 = arith.constant 0 : index
    %6 = vector.load %arg4[%c0_5, %c0_6] : memref<256x128xbf16, #tpu.memory_space<vmem>>, vector<256x128xbf16>
    %cst_7 = arith.constant dense<0.000000e+00> : vector<128x128xf32>
    %7 = tpu.matmul %5, %6, %cst_7 {dimension_numbers = #tpu.dot_dimension_numbers<[1], [0], [0], [1], [0, 0, 1, 1], [], []>} : vector<128x256xbf16>, vector<256x128xbf16>, vector<128x128xf32> -> vector<128x128xf32>
    %c0_8 = arith.constant 0 : index
    %c0_9 = arith.constant 0 : index
    %8 = vector.load %arg5[%c0_8, %c0_9] : memref<1x128xf32, #tpu.memory_space<vmem>>, vector<1x128xf32>
    %9 = vector.broadcast %8 : vector<1x128xf32> to vector<128x128xf32>
    %10 = arith.addf %7, %9 : vector<128x128xf32>
    %cst_10 = arith.constant 0.000000e+00 : f32
    %11 = vector.broadcast %cst_10 : f32 to vector<128x128xf32>
    %12 = arith.maximumf %10, %11 : vector<128x128xf32>
    %13 = arith.truncf %12 : vector<128x128xf32> to vector<128x128xbf16>
    %c0_11 = arith.constant 0 : index
    %c0_12 = arith.constant 0 : index
    %14 = vector.load %arg6[%c0_11, %c0_12] : memref<128x128xbf16, #tpu.memory_space<vmem>>, vector<128x128xbf16>
    tpu.vector_store %arg6[%c0_11, %c0_12], %13 {strides = array<i32>} : memref<128x128xbf16, #tpu.memory_space<vmem>>, vector<128x128xbf16>,
    return
  }
  func.func @transform_0(%arg0: i32) -> (i32, i32) {
    %c0_i32 = arith.constant 0 : i32
    %c0_i32_0 = arith.constant 0 : i32
    return %arg0, %c0_i32 : i32, i32
  }
  func.func @transform_1(%arg0: i32) -> (i32, i32) {
    %c0_i32 = arith.constant 0 : i32
    %c0_i32_0 = arith.constant 0 : i32
    %c0_i32_1 = arith.constant 0 : i32
    return %c0_i32, %c0_i32_0 : i32, i32
  }
  func.func @transform_2(%arg0: i32) -> (i32, i32) {
    %c0_i32 = arith.constant 0 : i32
    %c0_i32_0 = arith.constant 0 : i32
    return %arg0, %c0_i32 : i32, i32
  }
  func.func @transform_3(%arg0: i32) -> (i32, i32) {
    %c0_i32 = arith.constant 0 : i32
    %c0_i32_0 = arith.constant 0 : i32
    %c0_i32_1 = arith.constant 0 : i32
    return %c0_i32, %c0_i32_0 : i32, i32
  }
  func.func @transform_4(%arg0: i32) -> (i32, i32) {
    %c0_i32 = arith.constant 0 : i32
    %c0_i32_0 = arith.constant 0 : i32
    %c0_i32_1 = arith.constant 0 : i32
    return %c0_i32, %c0_i32_0 : i32, i32
  }
  func.func @transform_5(%arg0: i32) -> (i32, i32) {
    %c0_i32 = arith.constant 0 : i32
    %c0_i32_0 = arith.constant 0 : i32
    return %arg0, %c0_i32 : i32, i32
  }
}

module attributes {stable_mosaic.version = 11 : i64} {
  func.func @_sage_last_kernel(%arg0: i32, %arg1: memref<128x128xbf16, #tpu.memory_space<vmem>>, %arg2: memref<128x128xbf16, #tpu.memory_space<vmem>>, %arg3: memref<128x128xbf16, #tpu.memory_space<vmem>>, %arg4: memref<256x128xbf16, #tpu.memory_space<vmem>>, %arg5: memref<1x128xf32, #tpu.memory_space<vmem>>, %arg6: memref<128x128xbf16, #tpu.memory_space<vmem>>, %arg7: memref<1x128xf32, #tpu.memory_space<vmem>>, %arg8: memref<128x128xbf16, #tpu.memory_space<vmem>>, %arg9: memref<1x128xf32, #tpu.memory_space<vmem>>, %arg10: memref<128x128xf32, #tpu.memory_space<vmem>>, %arg11: memref<128x128xf32, #tpu.memory_space<vmem>>) attributes {dimension_semantics = [#tpu.dimension_semantics<parallel>], iteration_bounds = array<i64: 1>, scalar_prefetch = 0 : i64, scratch_operands = 0 : i64, tpu.core_type = #tpu.core_type<tc>, window_params = [{transform_indices = @transform_0, window_bounds = array<i64: 128, 128>}, {pipeline_mode = #tpu.pipeline_mode<synchronous>, transform_indices = @transform_1, window_bounds = array<i64: 128, 128>}, {transform_indices = @transform_2, window_bounds = array<i64: 128, 128>}, {pipeline_mode = #tpu.pipeline_mode<synchronous>, transform_indices = @transform_3, window_bounds = array<i64: 256, 128>}, {pipeline_mode = #tpu.pipeline_mode<synchronous>, transform_indices = @transform_4, window_bounds = array<i64: 1, 128>}, {pipeline_mode = #tpu.pipeline_mode<synchronous>, transform_indices = @transform_5, window_bounds = array<i64: 128, 128>}, {pipeline_mode = #tpu.pipeline_mode<synchronous>, transform_indices = @transform_6, window_bounds = array<i64: 1, 128>}, {pipeline_mode = #tpu.pipeline_mode<synchronous>, transform_indices = @transform_7, window_bounds = array<i64: 128, 128>}, {pipeline_mode = #tpu.pipeline_mode<synchronous>, transform_indices = @transform_8, window_bounds = array<i64: 1, 128>}, {transform_indices = @transform_9, window_bounds = array<i64: 128, 128>}, {transform_indices = @transform_10, window_bounds = array<i64: 128, 128>}]} {
    %c0 = arith.constant 0 : index
    %c0_0 = arith.constant 0 : index
    %0 = vector.load %arg1[%c0, %c0_0] : memref<128x128xbf16, #tpu.memory_space<vmem>>, vector<128x128xbf16>
    %c0_1 = arith.constant 0 : index
    %c0_2 = arith.constant 0 : index
    %1 = vector.load %arg2[%c0_1, %c0_2] : memref<128x128xbf16, #tpu.memory_space<vmem>>, vector<128x128xbf16>
    %cst = arith.constant dense<0.000000e+00> : vector<128x128xf32>
    %2 = tpu.matmul %0, %1, %cst {dimension_numbers = #tpu.dot_dimension_numbers<[1], [0], [0], [1], [0, 0, 1, 1], [], []>} : vector<128x128xbf16>, vector<128x128xbf16>, vector<128x128xf32> -> vector<128x128xf32>
    %3 = arith.truncf %2 : vector<128x128xf32> to vector<128x128xbf16>
    %c0_3 = arith.constant 0 : index
    %c0_4 = arith.constant 0 : index
    %4 = vector.load %arg3[%c0_3, %c0_4] : memref<128x128xbf16, #tpu.memory_space<vmem>>, vector<128x128xbf16>
    %5 = tpu.concatenate %3, %4 in 1 : vector<128x128xbf16>, vector<128x128xbf16> -> vector<128x256xbf16>
    %c0_5 = arith.constant 0 : index
    %c0_6 = arith.constant 0 : index
    %6 = vector.load %arg4[%c0_5, %c0_6] : memref<256x128xbf16, #tpu.memory_space<vmem>>, vector<256x128xbf16>
    %cst_7 = arith.constant dense<0.000000e+00> : vector<128x128xf32>
    %7 = tpu.matmul %5, %6, %cst_7 {dimension_numbers = #tpu.dot_dimension_numbers<[1], [0], [0], [1], [0, 0, 1, 1], [], []>} : vector<128x256xbf16>, vector<256x128xbf16>, vector<128x128xf32> -> vector<128x128xf32>
    %c0_8 = arith.constant 0 : index
    %c0_9 = arith.constant 0 : index
    %8 = vector.load %arg5[%c0_8, %c0_9] : memref<1x128xf32, #tpu.memory_space<vmem>>, vector<1x128xf32>
    %9 = vector.broadcast %8 : vector<1x128xf32> to vector<128x128xf32>
    %10 = arith.addf %7, %9 : vector<128x128xf32>
    %c0_10 = arith.constant 0 : index
    %c0_11 = arith.constant 0 : index
    %11 = vector.load %arg10[%c0_10, %c0_11] : memref<128x128xf32, #tpu.memory_space<vmem>>, vector<128x128xf32>
    tpu.vector_store %arg10[%c0_10, %c0_11], %10 {strides = array<i32>} : memref<128x128xf32, #tpu.memory_space<vmem>>, vector<128x128xf32>,
    %12 = arith.truncf %10 : vector<128x128xf32> to vector<128x128xbf16>
    %c0_12 = arith.constant 0 : index
    %c0_13 = arith.constant 0 : index
    %13 = vector.load %arg6[%c0_12, %c0_13] : memref<128x128xbf16, #tpu.memory_space<vmem>>, vector<128x128xbf16>
    %cst_14 = arith.constant dense<0.000000e+00> : vector<128x128xf32>
    %14 = tpu.matmul %12, %13, %cst_14 {dimension_numbers = #tpu.dot_dimension_numbers<[1], [0], [0], [1], [0, 0, 1, 1], [], []>} : vector<128x128xbf16>, vector<128x128xbf16>, vector<128x128xf32> -> vector<128x128xf32>
    %c0_15 = arith.constant 0 : index
    %c0_16 = arith.constant 0 : index
    %15 = vector.load %arg7[%c0_15, %c0_16] : memref<1x128xf32, #tpu.memory_space<vmem>>, vector<1x128xf32>
    %16 = vector.broadcast %15 : vector<1x128xf32> to vector<128x128xf32>
    %17 = arith.addf %14, %16 : vector<128x128xf32>
    %cst_17 = arith.constant 0.000000e+00 : f32
    %18 = vector.broadcast %cst_17 : f32 to vector<128x128xf32>
    %19 = arith.maximumf %17, %18 : vector<128x128xf32>
    %20 = arith.truncf %19 : vector<128x128xf32> to vector<128x128xbf16>
    %c0_18 = arith.constant 0 : index
    %c0_19 = arith.constant 0 : index
    %21 = vector.load %arg8[%c0_18, %c0_19] : memref<128x128xbf16, #tpu.memory_space<vmem>>, vector<128x128xbf16>
    %cst_20 = arith.constant dense<0.000000e+00> : vector<128x128xf32>
    %22 = tpu.matmul %20, %21, %cst_20 {dimension_numbers = #tpu.dot_dimension_numbers<[1], [0], [0], [1], [0, 0, 1, 1], [], []>} : vector<128x128xbf16>, vector<128x128xbf16>, vector<128x128xf32> -> vector<128x128xf32>
    %c0_21 = arith.constant 0 : index
    %c0_22 = arith.constant 0 : index
    %23 = vector.load %arg9[%c0_21, %c0_22] : memref<1x128xf32, #tpu.memory_space<vmem>>, vector<1x128xf32>
    %24 = vector.broadcast %23 : vector<1x128xf32> to vector<128x128xf32>
    %25 = arith.addf %22, %24 : vector<128x128xf32>
    %c0_23 = arith.constant 0 : index
    %c0_24 = arith.constant 0 : index
    %26 = vector.load %arg11[%c0_23, %c0_24] : memref<128x128xf32, #tpu.memory_space<vmem>>, vector<128x128xf32>
    tpu.vector_store %arg11[%c0_23, %c0_24], %25 {strides = array<i32>} : memref<128x128xf32, #tpu.memory_space<vmem>>, vector<128x128xf32>,
    return
  }
  func.func @transform_0(%arg0: i32) -> (i32, i32) {
    %c0_i32 = arith.constant 0 : i32
    %c0_i32_0 = arith.constant 0 : i32
    return %arg0, %c0_i32 : i32, i32
  }
  func.func @transform_1(%arg0: i32) -> (i32, i32) {
    %c0_i32 = arith.constant 0 : i32
    %c0_i32_0 = arith.constant 0 : i32
    %c0_i32_1 = arith.constant 0 : i32
    return %c0_i32, %c0_i32_0 : i32, i32
  }
  func.func @transform_2(%arg0: i32) -> (i32, i32) {
    %c0_i32 = arith.constant 0 : i32
    %c0_i32_0 = arith.constant 0 : i32
    return %arg0, %c0_i32 : i32, i32
  }
  func.func @transform_3(%arg0: i32) -> (i32, i32) {
    %c0_i32 = arith.constant 0 : i32
    %c0_i32_0 = arith.constant 0 : i32
    %c0_i32_1 = arith.constant 0 : i32
    return %c0_i32, %c0_i32_0 : i32, i32
  }
  func.func @transform_4(%arg0: i32) -> (i32, i32) {
    %c0_i32 = arith.constant 0 : i32
    %c0_i32_0 = arith.constant 0 : i32
    %c0_i32_1 = arith.constant 0 : i32
    return %c0_i32, %c0_i32_0 : i32, i32
  }
  func.func @transform_5(%arg0: i32) -> (i32, i32) {
    %c0_i32 = arith.constant 0 : i32
    %c0_i32_0 = arith.constant 0 : i32
    %c0_i32_1 = arith.constant 0 : i32
    return %c0_i32, %c0_i32_0 : i32, i32
  }
  func.func @transform_6(%arg0: i32) -> (i32, i32) {
    %c0_i32 = arith.constant 0 : i32
    %c0_i32_0 = arith.constant 0 : i32
    %c0_i32_1 = arith.constant 0 : i32
    return %c0_i32, %c0_i32_0 : i32, i32
  }
  func.func @transform_7(%arg0: i32) -> (i32, i32) {
    %c0_i32 = arith.constant 0 : i32
    %c0_i32_0 = arith.constant 0 : i32
    %c0_i32_1 = arith.constant 0 : i32
    return %c0_i32, %c0_i32_0 : i32, i32
  }
  func.func @transform_8(%arg0: i32) -> (i32, i32) {
    %c0_i32 = arith.constant 0 : i32
    %c0_i32_0 = arith.constant 0 : i32
    %c0_i32_1 = arith.constant 0 : i32
    return %c0_i32, %c0_i32_0 : i32, i32
  }
  func.func @transform_9(%arg0: i32) -> (i32, i32) {
    %c0_i32 = arith.constant 0 : i32
    %c0_i32_0 = arith.constant 0 : i32
    return %arg0, %c0_i32 : i32, i32
  }
  func.func @transform_10(%arg0: i32) -> (i32, i32) {
    %c0_i32 = arith.constant 0 : i32
    %c0_i32_0 = arith.constant 0 : i32
    return %arg0, %c0_i32 : i32, i32
  }
}

</mosaic_0001>

<llo_original>
// kernel: graphsage_forward.2
$region0: #{graphsage_forward.2}
  #allocation0 [shape = 'u32[]', space=smem, size = 0x4, offset = 0x4, fixed_abs, tag = 'smem constant byte address 0x4 - core index']
  #allocation1 [shape = 'u32[72,128]{1,0:T(1,128)}', space=vmem, size = 0x9000, scoped, tag = 'internal scratch']
  %s0 = inlined_call_operand.vmem [shape: bf16[128,128], index: 0, kind: input, shape index: {}]
  %s1 = inlined_call_operand.vmem [shape: bf16[128,128], index: 1, kind: input, shape index: {}, may-alias: {1,2}]
  %s2 = inlined_call_operand.vmem [shape: bf16[128,128], index: 2, kind: input, shape index: {}, may-alias: {1,2}]
  %s3 = inlined_call_operand.vmem [shape: bf16[256,128], index: 3, kind: input, shape index: {}]
  %s4 = inlined_call_operand.vmem [shape: f32[1,128], index: 4, kind: input, shape index: {}]
  %s5 = inlined_call_operand.vmem [shape: bf16[128,128], index: 5, kind: output, shape index: {}]
  %s6 = sld [smem:[#allocation0]]
  $region30: #{graphsage_forward.2} parent=0
    _
  %s8 = ssub.s32 1, %s6
  %s9 = scalar_select 0, %s8, %s6
  // Predicated region
  $region2: #{graphsage_forward.2} parent=0 // pred_check
    _
  $region3: #{graphsage_forward.2} parent=0 // pred_check_branch
    %11 = sbr.rel (0) target = $region5
  $region4: #{graphsage_forward.2} parent=0 // pred_region
    _
  $region5: #{graphsage_forward.2} parent=0 // pred_fallthru
    _
  // Predicated region
  $region6: #{graphsage_forward.2} parent=0 // pred_check
    _
  $region7: #{graphsage_forward.2} parent=0 // pred_check_branch
    %13 = sbr.rel (0) target = $region9
  $region8: #{graphsage_forward.2} parent=0 // pred_region
    _
  $region9: #{graphsage_forward.2} parent=0 // pred_fallthru
    _
  // Predicated region
  $region10: #{graphsage_forward.2} parent=0 // pred_check
    _
  $region11: #{graphsage_forward.2} parent=0 // pred_check_branch
    %15 = sbr.rel (0) target = $region13
  $region12: #{graphsage_forward.2} parent=0 // pred_region
    _
  $region13: #{graphsage_forward.2} parent=0 // pred_fallthru
    _
  // Predicated region
  $region14: #{graphsage_forward.2} parent=0 // pred_check
    _
  $region15: #{graphsage_forward.2} parent=0 // pred_check_branch
    %17 = sbr.rel (0) target = $region17
  $region16: #{graphsage_forward.2} parent=0 // pred_region
    _
  $region17: #{graphsage_forward.2} parent=0 // pred_fallthru
    _
  // Predicated region
  $region18: #{graphsage_forward.2} parent=0 // pred_check
    _
  $region19: #{graphsage_forward.2} parent=0 // pred_check_branch
    %19 = sbr.rel (0) target = $region21
  $region20: #{graphsage_forward.2} parent=0 // pred_region
    _
  $region21: #{graphsage_forward.2} parent=0 // pred_fallthru
    _
  %v20 = vld [vmem:[%s0] sm:$0xf]
  %v21 = vld [vmem:[%s0 + $0x4] sm:$0xf]
  %v22 = vld [vmem:[%s0 + $0x8] sm:$0xf]
  %v23 = vld [vmem:[%s0 + $0xc] sm:$0xf]
  %v24 = vld [vmem:[%s0 + $0x10] sm:$0xf]
  %v25 = vld [vmem:[%s0 + $0x14] sm:$0xf]
  %v26 = vld [vmem:[%s0 + $0x18] sm:$0xf]
  %v27 = vld [vmem:[%s0 + $0x1c] sm:$0xf]
  %v28 = vld [vmem:[%s0 + $0x20] sm:$0xf]
  %v29 = vld [vmem:[%s0 + $0x24] sm:$0xf]
  %v30 = vld [vmem:[%s0 + $0x28] sm:$0xf]
  %v31 = vld [vmem:[%s0 + $0x2c] sm:$0xf]
  %v32 = vld [vmem:[%s0 + $0x30] sm:$0xf]
  %v33 = vld [vmem:[%s0 + $0x34] sm:$0xf]
  %v34 = vld [vmem:[%s0 + $0x38] sm:$0xf]
  %v35 = vld [vmem:[%s0 + $0x3c] sm:$0xf]
  %v36 = vld [vmem:[%s1] sm:$0xf]
  %v37 = vld [vmem:[%s1 + $0x4] sm:$0xf]
  %v38 = vld [vmem:[%s1 + $0x8] sm:$0xf]
  %v39 = vld [vmem:[%s1 + $0xc] sm:$0xf]
  %v40 = vld [vmem:[%s1 + $0x10] sm:$0xf]
  %v41 = vld [vmem:[%s1 + $0x14] sm:$0xf]
  %v42 = vld [vmem:[%s1 + $0x18] sm:$0xf]
  %v43 = vld [vmem:[%s1 + $0x1c] sm:$0xf]
  %v44 = vld [vmem:[%s1 + $0x20] sm:$0xf]
  %v45 = vld [vmem:[%s1 + $0x24] sm:$0xf]
  %v46 = vld [vmem:[%s1 + $0x28] sm:$0xf]
  %v47 = vld [vmem:[%s1 + $0x2c] sm:$0xf]
  %v48 = vld [vmem:[%s1 + $0x30] sm:$0xf]
  %v49 = vld [vmem:[%s1 + $0x34] sm:$0xf]
  %v50 = vld [vmem:[%s1 + $0x38] sm:$0xf]
  %v51 = vld [vmem:[%s1 + $0x3c] sm:$0xf]
  %v68 = vunpack.c.l.b16 %v20
  %v69 = vunpack.c.l.b16 %v21
  %v70 = vunpack.c.l.b16 %v22
  %v71 = vunpack.c.l.b16 %v23
  %v72 = vunpack.c.l.b16 %v24
  %v73 = vunpack.c.l.b16 %v25
  %v74 = vunpack.c.l.b16 %v26
  %v75 = vunpack.c.l.b16 %v27
  %v76 = vunpack.c.l.b16 %v28
  %v77 = vunpack.c.l.b16 %v29
  %v78 = vunpack.c.l.b16 %v30
  %v79 = vunpack.c.l.b16 %v31
  %v80 = vunpack.c.l.b16 %v32
  %v81 = vunpack.c.l.b16 %v33
  %v82 = vunpack.c.l.b16 %v34
  %v83 = vunpack.c.l.b16 %v35
  %v84 = vpack.c.b16 %v69, %v68
  %v85 = vpack.c.b16 %v71, %v70
  %v86 = vpack.c.b16 %v73, %v72
  %v87 = vpack.c.b16 %v75, %v74
  %v88 = vpack.c.b16 %v77, %v76
  %v89 = vpack.c.b16 %v79, %v78
  %v90 = vpack.c.b16 %v81, %v80
  %v91 = vpack.c.b16 %v83, %v82
  %v116 = vunpack.c.l.b16 %v36
  %v117 = vunpack.c.l.b16 %v37
  %v118 = vunpack.c.l.b16 %v38
  %v119 = vunpack.c.l.b16 %v39
  %v120 = vunpack.c.l.b16 %v40
  %v121 = vunpack.c.l.b16 %v41
  %v122 = vunpack.c.l.b16 %v42
  %v123 = vunpack.c.l.b16 %v43
  %v124 = vunpack.c.l.b16 %v44
  %v125 = vunpack.c.l.b16 %v45
  %v126 = vunpack.c.l.b16 %v46
  %v127 = vunpack.c.l.b16 %v47
  %v128 = vunpack.c.l.b16 %v48
  %v129 = vunpack.c.l.b16 %v49
  %v130 = vunpack.c.l.b16 %v50
  %v131 = vunpack.c.l.b16 %v51
  %v132 = vpack.c.b16 %v117, %v116
  %v133 = vpack.c.b16 %v119, %v118
  %v134 = vpack.c.b16 %v121, %v120
  %v135 = vpack.c.b16 %v123, %v122
  %v136 = vpack.c.b16 %v125, %v124
  %v137 = vpack.c.b16 %v127, %v126
  %v138 = vpack.c.b16 %v129, %v128
  %v139 = vpack.c.b16 %v131, %v130
  %148 = vmatpush.bf16.msra.mxu0 %v139
  %149 = vmatpush.bf16.msra.mxu0 %v138
  %150 = vmatpush.bf16.msra.mxu0 %v137
  %151 = vmatpush.bf16.msra.mxu0 %v136
  %152 = vmatpush.bf16.msra.mxu0 %v135
  %153 = vmatpush.bf16.msra.mxu0 %v134
  %154 = vmatpush.bf16.msra.mxu0 %v133
  %155 = vmatpush.bf16.msra.mxu0 %v132
  %156 = vmatmul.bf16.gmra.mxu0 %v84
  %v157 = vpop.f32.mrf.mxu0
  %v158 = vadd.f32 0.0, %v157
  %v159 = vpop.f32.mrf.mxu0
  %v160 = vadd.f32 0.0, %v159
  %161 = vmatmul.bf16.gmra.mxu0 %v85
  %v162 = vpop.f32.mrf.mxu0
  %v163 = vadd.f32 0.0, %v162
  %v164 = vpop.f32.mrf.mxu0
  %v165 = vadd.f32 0.0, %v164
  %166 = vmatmul.bf16.gmra.mxu0 %v86
  %v167 = vpop.f32.mrf.mxu0
  %v168 = vadd.f32 0.0, %v167
  %v169 = vpop.f32.mrf.mxu0
  %v170 = vadd.f32 0.0, %v169
  %171 = vmatmul.bf16.gmra.mxu0 %v87
  %v172 = vpop.f32.mrf.mxu0
  %v173 = vadd.f32 0.0, %v172
  %v174 = vpop.f32.mrf.mxu0
  %v175 = vadd.f32 0.0, %v174
  %176 = vmatmul.bf16.gmra.mxu0 %v88
  %v177 = vpop.f32.mrf.mxu0
  %v178 = vadd.f32 0.0, %v177
  %v179 = vpop.f32.mrf.mxu0
  %v180 = vadd.f32 0.0, %v179
  %181 = vmatmul.bf16.gmra.mxu0 %v89
  %v182 = vpop.f32.mrf.mxu0
  %v183 = vadd.f32 0.0, %v182
  %v184 = vpop.f32.mrf.mxu0
  %v185 = vadd.f32 0.0, %v184
  %186 = vmatmul.bf16.gmra.mxu0 %v90
  %v187 = vpop.f32.mrf.mxu0
  %v188 = vadd.f32 0.0, %v187
  %v189 = vpop.f32.mrf.mxu0
  %v190 = vadd.f32 0.0, %v189
  %191 = vmatmul.bf16.gmra.mxu0 %v91
  %v192 = vpop.f32.mrf.mxu0
  %v193 = vadd.f32 0.0, %v192
  %v194 = vpop.f32.mrf.mxu0
  %v195 = vadd.f32 0.0, %v194
  %196 = vdwg.mxu0
  %v197 = vpack.c.bf16 %v158, %v158
  %v198 = vpack.c.bf16 %v160, %v160
  %v199 = vpack.c.bf16 %v163, %v163
  %v200 = vpack.c.bf16 %v165, %v165
  %v201 = vpack.c.bf16 %v168, %v168
  %v202 = vpack.c.bf16 %v170, %v170
  %v203 = vpack.c.bf16 %v173, %v173
  %v204 = vpack.c.bf16 %v175, %v175
  %v205 = vpack.c.bf16 %v178, %v178
  %v206 = vpack.c.bf16 %v180, %v180
  %v207 = vpack.c.bf16 %v183, %v183
  %v208 = vpack.c.bf16 %v185, %v185
  %v209 = vpack.c.bf16 %v188, %v188
  %v210 = vpack.c.bf16 %v190, %v190
  %v211 = vpack.c.bf16 %v193, %v193
  %v212 = vpack.c.bf16 %v195, %v195
  %v213 = vld [vmem:[%s2] sm:$0xf]
  %v214 = vld [vmem:[%s2 + $0x4] sm:$0xf]
  %v215 = vld [vmem:[%s2 + $0x8] sm:$0xf]
  %v216 = vld [vmem:[%s2 + $0xc] sm:$0xf]
  %v217 = vld [vmem:[%s2 + $0x10] sm:$0xf]
  %v218 = vld [vmem:[%s2 + $0x14] sm:$0xf]
  %v219 = vld [vmem:[%s2 + $0x18] sm:$0xf]
  %v220 = vld [vmem:[%s2 + $0x1c] sm:$0xf]
  %v221 = vld [vmem:[%s2 + $0x20] sm:$0xf]
  %v222 = vld [vmem:[%s2 + $0x24] sm:$0xf]
  %v223 = vld [vmem:[%s2 + $0x28] sm:$0xf]
  %v224 = vld [vmem:[%s2 + $0x2c] sm:$0xf]
  %v225 = vld [vmem:[%s2 + $0x30] sm:$0xf]
  %v226 = vld [vmem:[%s2 + $0x34] sm:$0xf]
  %v227 = vld [vmem:[%s2 + $0x38] sm:$0xf]
  %v228 = vld [vmem:[%s2 + $0x3c] sm:$0xf]
  %v245 = vunpack.c.l.b16 %v197
  %v246 = vunpack.c.l.b16 %v198
  %v247 = vunpack.c.l.b16 %v199
  %v248 = vunpack.c.l.b16 %v200
  %v249 = vunpack.c.l.b16 %v201
  %v250 = vunpack.c.l.b16 %v202
  %v251 = vunpack.c.l.b16 %v203
  %v252 = vunpack.c.l.b16 %v204
  %v253 = vunpack.c.l.b16 %v205
  %v254 = vunpack.c.l.b16 %v206
  %v255 = vunpack.c.l.b16 %v207
  %v256 = vunpack.c.l.b16 %v208
  %v257 = vunpack.c.l.b16 %v209
  %v258 = vunpack.c.l.b16 %v210
  %v259 = vunpack.c.l.b16 %v211
  %v260 = vunpack.c.l.b16 %v212
  %v261 = vpack.c.b16 %v246, %v245
  %v262 = vpack.c.b16 %v248, %v247
  %v263 = vpack.c.b16 %v250, %v249
  %v264 = vpack.c.b16 %v252, %v251
  %v265 = vpack.c.b16 %v254, %v253
  %v266 = vpack.c.b16 %v256, %v255
  %v267 = vpack.c.b16 %v258, %v257
  %v268 = vpack.c.b16 %v260, %v259
  %v293 = vunpack.c.l.b16 %v213
  %v294 = vunpack.c.l.b16 %v214
  %v295 = vunpack.c.l.b16 %v215
  %v296 = vunpack.c.l.b16 %v216
  %v297 = vunpack.c.l.b16 %v217
  %v298 = vunpack.c.l.b16 %v218
  %v299 = vunpack.c.l.b16 %v219
  %v300 = vunpack.c.l.b16 %v220
  %v301 = vunpack.c.l.b16 %v221
  %v302 = vunpack.c.l.b16 %v222
  %v303 = vunpack.c.l.b16 %v223
  %v304 = vunpack.c.l.b16 %v224
  %v305 = vunpack.c.l.b16 %v225
  %v306 = vunpack.c.l.b16 %v226
  %v307 = vunpack.c.l.b16 %v227
  %v308 = vunpack.c.l.b16 %v228
  %v309 = vpack.c.b16 %v294, %v293
  %v310 = vpack.c.b16 %v296, %v295
  %v311 = vpack.c.b16 %v298, %v297
  %v312 = vpack.c.b16 %v300, %v299
  %v313 = vpack.c.b16 %v302, %v301
  %v314 = vpack.c.b16 %v304, %v303
  %v315 = vpack.c.b16 %v306, %v305
  %v316 = vpack.c.b16 %v308, %v307
  %v325 = vld [vmem:[%s3] sm:$0xf]
  %v326 = vld [vmem:[%s3 + $0x4] sm:$0xf]
  %v327 = vld [vmem:[%s3 + $0x8] sm:$0xf]
  %v328 = vld [vmem:[%s3 + $0xc] sm:$0xf]
  %v329 = vld [vmem:[%s3 + $0x10] sm:$0xf]
  %v330 = vld [vmem:[%s3 + $0x14] sm:$0xf]
  %v331 = vld [vmem:[%s3 + $0x18] sm:$0xf]
  %v332 = vld [vmem:[%s3 + $0x1c] sm:$0xf]
  %v333 = vld [vmem:[%s3 + $0x20] sm:$0xf]
  %v334 = vld [vmem:[%s3 + $0x24] sm:$0xf]
  %v335 = vld [vmem:[%s3 + $0x28] sm:$0xf]
  %v336 = vld [vmem:[%s3 + $0x2c] sm:$0xf]
  %v337 = vld [vmem:[%s3 + $0x30] sm:$0xf]
  %v338 = vld [vmem:[%s3 + $0x34] sm:$0xf]
  %v339 = vld [vmem:[%s3 + $0x38] sm:$0xf]
  %v340 = vld [vmem:[%s3 + $0x3c] sm:$0xf]
  %v341 = vld [vmem:[%s3 + $0x40] sm:$0xf]
  %v342 = vld [vmem:[%s3 + $0x44] sm:$0xf]
  %v343 = vld [vmem:[%s3 + $0x48] sm:$0xf]
  %v344 = vld [vmem:[%s3 + $0x4c] sm:$0xf]
  %v345 = vld [vmem:[%s3 + $0x50] sm:$0xf]
  %v346 = vld [vmem:[%s3 + $0x54] sm:$0xf]
  %v347 = vld [vmem:[%s3 + $0x58] sm:$0xf]
  %v348 = vld [vmem:[%s3 + $0x5c] sm:$0xf]
  %v349 = vld [vmem:[%s3 + $0x60] sm:$0xf]
  %v350 = vld [vmem:[%s3 + $0x64] sm:$0xf]
  %v351 = vld [vmem:[%s3 + $0x68] sm:$0xf]
  %v352 = vld [vmem:[%s3 + $0x6c] sm:$0xf]
  %v353 = vld [vmem:[%s3 + $0x70] sm:$0xf]
  %v354 = vld [vmem:[%s3 + $0x74] sm:$0xf]
  %v355 = vld [vmem:[%s3 + $0x78] sm:$0xf]
  %v356 = vld [vmem:[%s3 + $0x7c] sm:$0xf]
  %v357 = vld [vmem:[%s4] sm:$0x1]
  %v359 = vperm.slane %v357, 0
  %v393 = vunpack.c.l.b16 %v325
  %v394 = vunpack.c.l.b16 %v326
  %v395 = vunpack.c.l.b16 %v327
  %v396 = vunpack.c.l.b16 %v328
  %v397 = vunpack.c.l.b16 %v329
  %v398 = vunpack.c.l.b16 %v330
  %v399 = vunpack.c.l.b16 %v331
  %v400 = vunpack.c.l.b16 %v332
  %v401 = vunpack.c.l.b16 %v333
  %v402 = vunpack.c.l.b16 %v334
  %v403 = vunpack.c.l.b16 %v335
  %v404 = vunpack.c.l.b16 %v336
  %v405 = vunpack.c.l.b16 %v337
  %v406 = vunpack.c.l.b16 %v338
  %v407 = vunpack.c.l.b16 %v339
  %v408 = vunpack.c.l.b16 %v340
  %v409 = vunpack.c.l.b16 %v341
  %v410 = vunpack.c.l.b16 %v342
  %v411 = vunpack.c.l.b16 %v343
  %v412 = vunpack.c.l.b16 %v344
  %v413 = vunpack.c.l.b16 %v345
  %v414 = vunpack.c.l.b16 %v346
  %v415 = vunpack.c.l.b16 %v347
  %v416 = vunpack.c.l.b16 %v348
  %v417 = vunpack.c.l.b16 %v349
  %v418 = vunpack.c.l.b16 %v350
  %v419 = vunpack.c.l.b16 %v351
  %v420 = vunpack.c.l.b16 %v352
  %v421 = vunpack.c.l.b16 %v353
  %v422 = vunpack.c.l.b16 %v354
  %v423 = vunpack.c.l.b16 %v355
  %v424 = vunpack.c.l.b16 %v356
  %v425 = vpack.c.b16 %v394, %v393
  %v426 = vpack.c.b16 %v396, %v395
  %v427 = vpack.c.b16 %v398, %v397
  %v428 = vpack.c.b16 %v400, %v399
  %v429 = vpack.c.b16 %v402, %v401
  %v430 = vpack.c.b16 %v404, %v403
  %v431 = vpack.c.b16 %v406, %v405
  %v432 = vpack.c.b16 %v408, %v407
  %v433 = vpack.c.b16 %v410, %v409
  %v434 = vpack.c.b16 %v412, %v411
  %v435 = vpack.c.b16 %v414, %v413
  %v436 = vpack.c.b16 %v416, %v415
  %v437 = vpack.c.b16 %v418, %v417
  %v438 = vpack.c.b16 %v420, %v419
  %v439 = vpack.c.b16 %v422, %v421
  %v440 = vpack.c.b16 %v424, %v423
  %457 = vmatpush.bf16.msra.mxu0 %v432
  %458 = vmatpush.bf16.msra.mxu0 %v431
  %459 = vmatpush.bf16.msra.mxu0 %v430
  %460 = vmatpush.bf16.msra.mxu0 %v429
  %461 = vmatpush.bf16.msra.mxu0 %v428
  %462 = vmatpush.bf16.msra.mxu0 %v427
  %463 = vmatpush.bf16.msra.mxu0 %v426
  %464 = vmatpush.bf16.msra.mxu0 %v425
  %465 = vmatmul.bf16.gmra.mxu0 %v261
  %v466 = vpop.f32.mrf.mxu0
  %v467 = vadd.f32 %v359, %v466
  %v468 = vpop.f32.mrf.mxu0
  %v469 = vadd.f32 %v359, %v468
  %470 = vmatmul.bf16.gmra.mxu0 %v262
  %v471 = vpop.f32.mrf.mxu0
  %v472 = vadd.f32 %v359, %v471
  %v473 = vpop.f32.mrf.mxu0
  %v474 = vadd.f32 %v359, %v473
  %475 = vmatmul.bf16.gmra.mxu0 %v263
  %v476 = vpop.f32.mrf.mxu0
  %v477 = vadd.f32 %v359, %v476
  %v478 = vpop.f32.mrf.mxu0
  %v479 = vadd.f32 %v359, %v478
  %480 = vmatmul.bf16.gmra.mxu0 %v264
  %v481 = vpop.f32.mrf.mxu0
  %v482 = vadd.f32 %v359, %v481
  %v483 = vpop.f32.mrf.mxu0
  %v484 = vadd.f32 %v359, %v483
  %485 = vmatmul.bf16.gmra.mxu0 %v265
  %v486 = vpop.f32.mrf.mxu0
  %v487 = vadd.f32 %v359, %v486
  %v488 = vpop.f32.mrf.mxu0
  %v489 = vadd.f32 %v359, %v488
  %490 = vmatmul.bf16.gmra.mxu0 %v266
  %v491 = vpop.f32.mrf.mxu0
  %v492 = vadd.f32 %v359, %v491
  %v493 = vpop.f32.mrf.mxu0
  %v494 = vadd.f32 %v359, %v493
  %495 = vmatmul.bf16.gmra.mxu0 %v267
  %v496 = vpop.f32.mrf.mxu0
  %v497 = vadd.f32 %v359, %v496
  %v498 = vpop.f32.mrf.mxu0
  %v499 = vadd.f32 %v359, %v498
  %500 = vmatmul.bf16.gmra.mxu0 %v268
  %v501 = vpop.f32.mrf.mxu0
  %v502 = vadd.f32 %v359, %v501
  %v503 = vpop.f32.mrf.mxu0
  %v504 = vadd.f32 %v359, %v503
  %505 = vdwg.mxu0
  %506 = vmatpush.bf16.msra.mxu0 %v440
  %507 = vmatpush.bf16.msra.mxu0 %v439
  %508 = vmatpush.bf16.msra.mxu0 %v438
  %509 = vmatpush.bf16.msra.mxu0 %v437
  %510 = vmatpush.bf16.msra.mxu0 %v436
  %511 = vmatpush.bf16.msra.mxu0 %v435
  %512 = vmatpush.bf16.msra.mxu0 %v434
  %513 = vmatpush.bf16.msra.mxu0 %v433
  %514 = vmatmul.bf16.gmra.mxu0 %v309
  %v515 = vpop.f32.mrf.mxu0
  %v516 = vadd.f32 %v467, %v515
  %v517 = vpop.f32.mrf.mxu0
  %v518 = vadd.f32 %v469, %v517
  %519 = vmatmul.bf16.gmra.mxu0 %v310
  %v520 = vpop.f32.mrf.mxu0
  %v521 = vadd.f32 %v472, %v520
  %v522 = vpop.f32.mrf.mxu0
  %v523 = vadd.f32 %v474, %v522
  %524 = vmatmul.bf16.gmra.mxu0 %v311
  %v525 = vpop.f32.mrf.mxu0
  %v526 = vadd.f32 %v477, %v525
  %v527 = vpop.f32.mrf.mxu0
  %v528 = vadd.f32 %v479, %v527
  %529 = vmatmul.bf16.gmra.mxu0 %v312
  %v530 = vpop.f32.mrf.mxu0
  %v531 = vadd.f32 %v482, %v530
  %v532 = vpop.f32.mrf.mxu0
  %v533 = vadd.f32 %v484, %v532
  %534 = vmatmul.bf16.gmra.mxu0 %v313
  %v535 = vpop.f32.mrf.mxu0
  %v536 = vadd.f32 %v487, %v535
  %v537 = vpop.f32.mrf.mxu0
  %v538 = vadd.f32 %v489, %v537
  %539 = vmatmul.bf16.gmra.mxu0 %v314
  %v540 = vpop.f32.mrf.mxu0
  %v541 = vadd.f32 %v492, %v540
  %v542 = vpop.f32.mrf.mxu0
  %v543 = vadd.f32 %v494, %v542
  %544 = vmatmul.bf16.gmra.mxu0 %v315
  %v545 = vpop.f32.mrf.mxu0
  %v546 = vadd.f32 %v497, %v545
  %v547 = vpop.f32.mrf.mxu0
  %v548 = vadd.f32 %v499, %v547
  %549 = vmatmul.bf16.gmra.mxu0 %v316
  %v550 = vpop.f32.mrf.mxu0
  %v551 = vadd.f32 %v502, %v550
  %v552 = vpop.f32.mrf.mxu0
  %v553 = vadd.f32 %v504, %v552
  %554 = vdwg.mxu0
  %v555 = vmax.f32 %v516, 0.0
  %v556 = vmax.f32 %v518, 0.0
  %v557 = vmax.f32 %v521, 0.0
  %v558 = vmax.f32 %v523, 0.0
  %v559 = vmax.f32 %v526, 0.0
  %v560 = vmax.f32 %v528, 0.0
  %v561 = vmax.f32 %v531, 0.0
  %v562 = vmax.f32 %v533, 0.0
  %v563 = vmax.f32 %v536, 0.0
  %v564 = vmax.f32 %v538, 0.0
  %v565 = vmax.f32 %v541, 0.0
  %v566 = vmax.f32 %v543, 0.0
  %v567 = vmax.f32 %v546, 0.0
  %v568 = vmax.f32 %v548, 0.0
  %v569 = vmax.f32 %v551, 0.0
  %v570 = vmax.f32 %v553, 0.0
  %v571 = vpack.c.bf16 %v555, %v555
  %v572 = vpack.c.bf16 %v556, %v556
  %v573 = vpack.c.bf16 %v557, %v557
  %v574 = vpack.c.bf16 %v558, %v558
  %v575 = vpack.c.bf16 %v559, %v559
  %v576 = vpack.c.bf16 %v560, %v560
  %v577 = vpack.c.bf16 %v561, %v561
  %v578 = vpack.c.bf16 %v562, %v562
  %v579 = vpack.c.bf16 %v563, %v563
  %v580 = vpack.c.bf16 %v564, %v564
  %v581 = vpack.c.bf16 %v565, %v565
  %v582 = vpack.c.bf16 %v566, %v566
  %v583 = vpack.c.bf16 %v567, %v567
  %v584 = vpack.c.bf16 %v568, %v568
  %v585 = vpack.c.bf16 %v569, %v569
  %v586 = vpack.c.bf16 %v570, %v570
  %587 = vst [vmem:[%s5] sm:$0xf] %v571
  %588 = vst [vmem:[%s5 + $0x4] sm:$0xf] %v572
  %589 = vst [vmem:[%s5 + $0x8] sm:$0xf] %v573
  %590 = vst [vmem:[%s5 + $0xc] sm:$0xf] %v574
  %591 = vst [vmem:[%s5 + $0x10] sm:$0xf] %v575
  %592 = vst [vmem:[%s5 + $0x14] sm:$0xf] %v576
  %593 = vst [vmem:[%s5 + $0x18] sm:$0xf] %v577
  %594 = vst [vmem:[%s5 + $0x1c] sm:$0xf] %v578
  %595 = vst [vmem:[%s5 + $0x20] sm:$0xf] %v579
  %596 = vst [vmem:[%s5 + $0x24] sm:$0xf] %v580
  %597 = vst [vmem:[%s5 + $0x28] sm:$0xf] %v581
  %598 = vst [vmem:[%s5 + $0x2c] sm:$0xf] %v582
  %599 = vst [vmem:[%s5 + $0x30] sm:$0xf] %v583
  %600 = vst [vmem:[%s5 + $0x34] sm:$0xf] %v584
  %601 = vst [vmem:[%s5 + $0x38] sm:$0xf] %v585
  %602 = vst [vmem:[%s5 + $0x3c] sm:$0xf] %v586
  // Predicated region
  $region22: #{graphsage_forward.2} parent=0 // pred_check
    _
  $region23: #{graphsage_forward.2} parent=0 // pred_check_branch
    %604 = sbr.rel (0) target = $region25
  $region24: #{graphsage_forward.2} parent=0 // pred_region
    _
  $region25: #{graphsage_forward.2} parent=0 // pred_fallthru
    _
  // Predicated region
  $region26: #{graphsage_forward.2} parent=0 // pred_check
    _
  $region27: #{graphsage_forward.2} parent=0 // pred_check_branch
    %606 = sbr.rel (0) target = $region29
  $region28: #{graphsage_forward.2} parent=0 // pred_region
    _
  $region29: #{graphsage_forward.2} parent=0 // pred_fallthru
    _

// kernel: graphsage_forward.3
$region0: #{graphsage_forward.3}
  #allocation0 [shape = 'u32[]', space=smem, size = 0x4, offset = 0x4, fixed_abs, tag = 'smem constant byte address 0x4 - core index']
  #allocation1 [shape = 'u32[72,128]{1,0:T(1,128)}', space=vmem, size = 0x9000, scoped, tag = 'internal scratch']
  %s0 = inlined_call_operand.vmem [shape: bf16[128,128], index: 0, kind: input, shape index: {}]
  %s1 = inlined_call_operand.vmem [shape: bf16[128,128], index: 1, kind: input, shape index: {}, may-alias: {1,2}]
  %s2 = inlined_call_operand.vmem [shape: bf16[128,128], index: 2, kind: input, shape index: {}, may-alias: {1,2}]
  %s3 = inlined_call_operand.vmem [shape: bf16[256,128], index: 3, kind: input, shape index: {}]
  %s4 = inlined_call_operand.vmem [shape: f32[1,128], index: 4, kind: input, shape index: {}]
  %s5 = inlined_call_operand.vmem [shape: bf16[128,128], index: 5, kind: input, shape index: {}]
  %s6 = inlined_call_operand.vmem [shape: f32[1,128], index: 6, kind: input, shape index: {}]
  %s7 = inlined_call_operand.vmem [shape: bf16[128,128], index: 7, kind: input, shape index: {}]
  %s8 = inlined_call_operand.vmem [shape: f32[1,128], index: 8, kind: input, shape index: {}]
  %s9 = inlined_call_operand.vmem [shape: f32[128,128], index: 9, kind: output, shape index: {0}]
  %s10 = inlined_call_operand.vmem [shape: f32[128,128], index: 10, kind: output, shape index: {1}]
  %11 = xla_tuple %s9, %s10
  %s12 = sld [smem:[#allocation0]]
  $region54: #{graphsage_forward.3} parent=0
    _
  %s14 = ssub.s32 1, %s12
  %s15 = scalar_select 0, %s14, %s12
  // Predicated region
  $region2: #{graphsage_forward.3} parent=0 // pred_check
    _
  $region3: #{graphsage_forward.3} parent=0 // pred_check_branch
    %17 = sbr.rel (0) target = $region5
  $region4: #{graphsage_forward.3} parent=0 // pred_region
    _
  $region5: #{graphsage_forward.3} parent=0 // pred_fallthru
    _
  // Predicated region
  $region6: #{graphsage_forward.3} parent=0 // pred_check
    _
  $region7: #{graphsage_forward.3} parent=0 // pred_check_branch
    %19 = sbr.rel (0) target = $region9
  $region8: #{graphsage_forward.3} parent=0 // pred_region
    _
  $region9: #{graphsage_forward.3} parent=0 // pred_fallthru
    _
  // Predicated region
  $region10: #{graphsage_forward.3} parent=0 // pred_check
    _
  $region11: #{graphsage_forward.3} parent=0 // pred_check_branch
    %21 = sbr.rel (0) target = $region13
  $region12: #{graphsage_forward.3} parent=0 // pred_region
    _
  $region13: #{graphsage_forward.3} parent=0 // pred_fallthru
    _
  // Predicated region
  $region14: #{graphsage_forward.3} parent=0 // pred_check
    _
  $region15: #{graphsage_forward.3} parent=0 // pred_check_branch
    %23 = sbr.rel (0) target = $region17
  $region16: #{graphsage_forward.3} parent=0 // pred_region
    _
  $region17: #{graphsage_forward.3} parent=0 // pred_fallthru
    _
  // Predicated region
  $region18: #{graphsage_forward.3} parent=0 // pred_check
    _
  $region19: #{graphsage_forward.3} parent=0 // pred_check_branch
    %25 = sbr.rel (0) target = $region21
  $region20: #{graphsage_forward.3} parent=0 // pred_region
    _
  $region21: #{graphsage_forward.3} parent=0 // pred_fallthru
    _
  // Predicated region
  $region22: #{graphsage_forward.3} parent=0 // pred_check
    _
  $region23: #{graphsage_forward.3} parent=0 // pred_check_branch
    %27 = sbr.rel (0) target = $region25
  $region24: #{graphsage_forward.3} parent=0 // pred_region
    _
  $region25: #{graphsage_forward.3} parent=0 // pred_fallthru
    _
  // Predicated region
  $region26: #{graphsage_forward.3} parent=0 // pred_check
    _
  $region27: #{graphsage_forward.3} parent=0 // pred_check_branch
    %29 = sbr.rel (0) target = $region29
  $region28: #{graphsage_forward.3} parent=0 // pred_region
    _
  $region29: #{graphsage_forward.3} parent=0 // pred_fallthru
    _
  // Predicated region
  $region30: #{graphsage_forward.3} parent=0 // pred_check
    _
  $region31: #{graphsage_forward.3} parent=0 // pred_check_branch
    %31 = sbr.rel (0) target = $region33
  $region32: #{graphsage_forward.3} parent=0 // pred_region
    _
  $region33: #{graphsage_forward.3} parent=0 // pred_fallthru
    _
  // Predicated region
  $region34: #{graphsage_forward.3} parent=0 // pred_check
    _
  $region35: #{graphsage_forward.3} parent=0 // pred_check_branch
    %33 = sbr.rel (0) target = $region37
  $region36: #{graphsage_forward.3} parent=0 // pred_region
    _
  $region37: #{graphsage_forward.3} parent=0 // pred_fallthru
    _
  %v34 = vld [vmem:[%s0] sm:$0xf]
  %v35 = vld [vmem:[%s0 + $0x4] sm:$0xf]
  %v36 = vld [vmem:[%s0 + $0x8] sm:$0xf]
  %v37 = vld [vmem:[%s0 + $0xc] sm:$0xf]
  %v38 = vld [vmem:[%s0 + $0x10] sm:$0xf]
  %v39 = vld [vmem:[%s0 + $0x14] sm:$0xf]
  %v40 = vld [vmem:[%s0 + $0x18] sm:$0xf]
  %v41 = vld [vmem:[%s0 + $0x1c] sm:$0xf]
  %v42 = vld [vmem:[%s0 + $0x20] sm:$0xf]
  %v43 = vld [vmem:[%s0 + $0x24] sm:$0xf]
  %v44 = vld [vmem:[%s0 + $0x28] sm:$0xf]
  %v45 = vld [vmem:[%s0 + $0x2c] sm:$0xf]
  %v46 = vld [vmem:[%s0 + $0x30] sm:$0xf]
  %v47 = vld [vmem:[%s0 + $0x34] sm:$0xf]
  %v48 = vld [vmem:[%s0 + $0x38] sm:$0xf]
  %v49 = vld [vmem:[%s0 + $0x3c] sm:$0xf]
  %v50 = vld [vmem:[%s1] sm:$0xf]
  %v51 = vld [vmem:[%s1 + $0x4] sm:$0xf]
  %v52 = vld [vmem:[%s1 + $0x8] sm:$0xf]
  %v53 = vld [vmem:[%s1 + $0xc] sm:$0xf]
  %v54 = vld [vmem:[%s1 + $0x10] sm:$0xf]
  %v55 = vld [vmem:[%s1 + $0x14] sm:$0xf]
  %v56 = vld [vmem:[%s1 + $0x18] sm:$0xf]
  %v57 = vld [vmem:[%s1 + $0x1c] sm:$0xf]
  %v58 = vld [vmem:[%s1 + $0x20] sm:$0xf]
  %v59 = vld [vmem:[%s1 + $0x24] sm:$0xf]
  %v60 = vld [vmem:[%s1 + $0x28] sm:$0xf]
  %v61 = vld [vmem:[%s1 + $0x2c] sm:$0xf]
  %v62 = vld [vmem:[%s1 + $0x30] sm:$0xf]
  %v63 = vld [vmem:[%s1 + $0x34] sm:$0xf]
  %v64 = vld [vmem:[%s1 + $0x38] sm:$0xf]
  %v65 = vld [vmem:[%s1 + $0x3c] sm:$0xf]
  %v82 = vunpack.c.l.b16 %v34
  %v83 = vunpack.c.l.b16 %v35
  %v84 = vunpack.c.l.b16 %v36
  %v85 = vunpack.c.l.b16 %v37
  %v86 = vunpack.c.l.b16 %v38
  %v87 = vunpack.c.l.b16 %v39
  %v88 = vunpack.c.l.b16 %v40
  %v89 = vunpack.c.l.b16 %v41
  %v90 = vunpack.c.l.b16 %v42
  %v91 = vunpack.c.l.b16 %v43
  %v92 = vunpack.c.l.b16 %v44
  %v93 = vunpack.c.l.b16 %v45
  %v94 = vunpack.c.l.b16 %v46
  %v95 = vunpack.c.l.b16 %v47
  %v96 = vunpack.c.l.b16 %v48
  %v97 = vunpack.c.l.b16 %v49
  %v98 = vpack.c.b16 %v83, %v82
  %v99 = vpack.c.b16 %v85, %v84
  %v100 = vpack.c.b16 %v87, %v86
  %v101 = vpack.c.b16 %v89, %v88
  %v102 = vpack.c.b16 %v91, %v90
  %v103 = vpack.c.b16 %v93, %v92
  %v104 = vpack.c.b16 %v95, %v94
  %v105 = vpack.c.b16 %v97, %v96
  %v130 = vunpack.c.l.b16 %v50
  %v131 = vunpack.c.l.b16 %v51
  %v132 = vunpack.c.l.b16 %v52
  %v133 = vunpack.c.l.b16 %v53
  %v134 = vunpack.c.l.b16 %v54
  %v135 = vunpack.c.l.b16 %v55
  %v136 = vunpack.c.l.b16 %v56
  %v137 = vunpack.c.l.b16 %v57
  %v138 = vunpack.c.l.b16 %v58
  %v139 = vunpack.c.l.b16 %v59
  %v140 = vunpack.c.l.b16 %v60
  %v141 = vunpack.c.l.b16 %v61
  %v142 = vunpack.c.l.b16 %v62
  %v143 = vunpack.c.l.b16 %v63
  %v144 = vunpack.c.l.b16 %v64
  %v145 = vunpack.c.l.b16 %v65
  %v146 = vpack.c.b16 %v131, %v130
  %v147 = vpack.c.b16 %v133, %v132
  %v148 = vpack.c.b16 %v135, %v134
  %v149 = vpack.c.b16 %v137, %v136
  %v150 = vpack.c.b16 %v139, %v138
  %v151 = vpack.c.b16 %v141, %v140
  %v152 = vpack.c.b16 %v143, %v142
  %v153 = vpack.c.b16 %v145, %v144
  %162 = vmatpush.bf16.msra.mxu0 %v153
  %163 = vmatpush.bf16.msra.mxu0 %v152
  %164 = vmatpush.bf16.msra.mxu0 %v151
  %165 = vmatpush.bf16.msra.mxu0 %v150
  %166 = vmatpush.bf16.msra.mxu0 %v149
  %167 = vmatpush.bf16.msra.mxu0 %v148
  %168 = vmatpush.bf16.msra.mxu0 %v147
  %169 = vmatpush.bf16.msra.mxu0 %v146
  %170 = vmatmul.bf16.gmra.mxu0 %v98
  %v171 = vpop.f32.mrf.mxu0
  %v172 = vadd.f32 0.0, %v171
  %v173 = vpop.f32.mrf.mxu0
  %v174 = vadd.f32 0.0, %v173
  %175 = vmatmul.bf16.gmra.mxu0 %v99
  %v176 = vpop.f32.mrf.mxu0
  %v177 = vadd.f32 0.0, %v176
  %v178 = vpop.f32.mrf.mxu0
  %v179 = vadd.f32 0.0, %v178
  %180 = vmatmul.bf16.gmra.mxu0 %v100
  %v181 = vpop.f32.mrf.mxu0
  %v182 = vadd.f32 0.0, %v181
  %v183 = vpop.f32.mrf.mxu0
  %v184 = vadd.f32 0.0, %v183
  %185 = vmatmul.bf16.gmra.mxu0 %v101
  %v186 = vpop.f32.mrf.mxu0
  %v187 = vadd.f32 0.0, %v186
  %v188 = vpop.f32.mrf.mxu0
  %v189 = vadd.f32 0.0, %v188
  %190 = vmatmul.bf16.gmra.mxu0 %v102
  %v191 = vpop.f32.mrf.mxu0
  %v192 = vadd.f32 0.0, %v191
  %v193 = vpop.f32.mrf.mxu0
  %v194 = vadd.f32 0.0, %v193
  %195 = vmatmul.bf16.gmra.mxu0 %v103
  %v196 = vpop.f32.mrf.mxu0
  %v197 = vadd.f32 0.0, %v196
  %v198 = vpop.f32.mrf.mxu0
  %v199 = vadd.f32 0.0, %v198
  %200 = vmatmul.bf16.gmra.mxu0 %v104
  %v201 = vpop.f32.mrf.mxu0
  %v202 = vadd.f32 0.0, %v201
  %v203 = vpop.f32.mrf.mxu0
  %v204 = vadd.f32 0.0, %v203
  %205 = vmatmul.bf16.gmra.mxu0 %v105
  %v206 = vpop.f32.mrf.mxu0
  %v207 = vadd.f32 0.0, %v206
  %v208 = vpop.f32.mrf.mxu0
  %v209 = vadd.f32 0.0, %v208
  %210 = vdwg.mxu0
  %v211 = vpack.c.bf16 %v172, %v172
  %v212 = vpack.c.bf16 %v174, %v174
  %v213 = vpack.c.bf16 %v177, %v177
  %v214 = vpack.c.bf16 %v179, %v179
  %v215 = vpack.c.bf16 %v182, %v182
  %v216 = vpack.c.bf16 %v184, %v184
  %v217 = vpack.c.bf16 %v187, %v187
  %v218 = vpack.c.bf16 %v189, %v189
  %v219 = vpack.c.bf16 %v192, %v192
  %v220 = vpack.c.bf16 %v194, %v194
  %v221 = vpack.c.bf16 %v197, %v197
  %v222 = vpack.c.bf16 %v199, %v199
  %v223 = vpack.c.bf16 %v202, %v202
  %v224 = vpack.c.bf16 %v204, %v204
  %v225 = vpack.c.bf16 %v207, %v207
  %v226 = vpack.c.bf16 %v209, %v209
  %v227 = vld [vmem:[%s2] sm:$0xf]
  %v228 = vld [vmem:[%s2 + $0x4] sm:$0xf]
  %v229 = vld [vmem:[%s2 + $0x8] sm:$0xf]
  %v230 = vld [vmem:[%s2 + $0xc] sm:$0xf]
  %v231 = vld [vmem:[%s2 + $0x10] sm:$0xf]
  %v232 = vld [vmem:[%s2 + $0x14] sm:$0xf]
  %v233 = vld [vmem:[%s2 + $0x18] sm:$0xf]
  %v234 = vld [vmem:[%s2 + $0x1c] sm:$0xf]
  %v235 = vld [vmem:[%s2 + $0x20] sm:$0xf]
  %v236 = vld [vmem:[%s2 + $0x24] sm:$0xf]
  %v237 = vld [vmem:[%s2 + $0x28] sm:$0xf]
  %v238 = vld [vmem:[%s2 + $0x2c] sm:$0xf]
  %v239 = vld [vmem:[%s2 + $0x30] sm:$0xf]
  %v240 = vld [vmem:[%s2 + $0x34] sm:$0xf]
  %v241 = vld [vmem:[%s2 + $0x38] sm:$0xf]
  %v242 = vld [vmem:[%s2 + $0x3c] sm:$0xf]
  %v259 = vunpack.c.l.b16 %v211
  %v260 = vunpack.c.l.b16 %v212
  %v261 = vunpack.c.l.b16 %v213
  %v262 = vunpack.c.l.b16 %v214
  %v263 = vunpack.c.l.b16 %v215
  %v264 = vunpack.c.l.b16 %v216
  %v265 = vunpack.c.l.b16 %v217
  %v266 = vunpack.c.l.b16 %v218
  %v267 = vunpack.c.l.b16 %v219
  %v268 = vunpack.c.l.b16 %v220
  %v269 = vunpack.c.l.b16 %v221
  %v270 = vunpack.c.l.b16 %v222
  %v271 = vunpack.c.l.b16 %v223
  %v272 = vunpack.c.l.b16 %v224
  %v273 = vunpack.c.l.b16 %v225
  %v274 = vunpack.c.l.b16 %v226
  %v275 = vpack.c.b16 %v260, %v259
  %v276 = vpack.c.b16 %v262, %v261
  %v277 = vpack.c.b16 %v264, %v263
  %v278 = vpack.c.b16 %v266, %v265
  %v279 = vpack.c.b16 %v268, %v267
  %v280 = vpack.c.b16 %v270, %v269
  %v281 = vpack.c.b16 %v272, %v271
  %v282 = vpack.c.b16 %v274, %v273
  %v307 = vunpack.c.l.b16 %v227
  %v308 = vunpack.c.l.b16 %v228
  %v309 = vunpack.c.l.b16 %v229
  %v310 = vunpack.c.l.b16 %v230
  %v311 = vunpack.c.l.b16 %v231
  %v312 = vunpack.c.l.b16 %v232
  %v313 = vunpack.c.l.b16 %v233
  %v314 = vunpack.c.l.b16 %v234
  %v315 = vunpack.c.l.b16 %v235
  %v316 = vunpack.c.l.b16 %v236
  %v317 = vunpack.c.l.b16 %v237
  %v318 = vunpack.c.l.b16 %v238
  %v319 = vunpack.c.l.b16 %v239
  %v320 = vunpack.c.l.b16 %v240
  %v321 = vunpack.c.l.b16 %v241
  %v322 = vunpack.c.l.b16 %v242
  %v323 = vpack.c.b16 %v308, %v307
  %v324 = vpack.c.b16 %v310, %v309
  %v325 = vpack.c.b16 %v312, %v311
  %v326 = vpack.c.b16 %v314, %v313
  %v327 = vpack.c.b16 %v316, %v315
  %v328 = vpack.c.b16 %v318, %v317
  %v329 = vpack.c.b16 %v320, %v319
  %v330 = vpack.c.b16 %v322, %v321
  %v339 = vld [vmem:[%s3] sm:$0xf]
  %v340 = vld [vmem:[%s3 + $0x4] sm:$0xf]
  %v341 = vld [vmem:[%s3 + $0x8] sm:$0xf]
  %v342 = vld [vmem:[%s3 + $0xc] sm:$0xf]
  %v343 = vld [vmem:[%s3 + $0x10] sm:$0xf]
  %v344 = vld [vmem:[%s3 + $0x14] sm:$0xf]
  %v345 = vld [vmem:[%s3 + $0x18] sm:$0xf]
  %v346 = vld [vmem:[%s3 + $0x1c] sm:$0xf]
  %v347 = vld [vmem:[%s3 + $0x20] sm:$0xf]
  %v348 = vld [vmem:[%s3 + $0x24] sm:$0xf]
  %v349 = vld [vmem:[%s3 + $0x28] sm:$0xf]
  %v350 = vld [vmem:[%s3 + $0x2c] sm:$0xf]
  %v351 = vld [vmem:[%s3 + $0x30] sm:$0xf]
  %v352 = vld [vmem:[%s3 + $0x34] sm:$0xf]
  %v353 = vld [vmem:[%s3 + $0x38] sm:$0xf]
  %v354 = vld [vmem:[%s3 + $0x3c] sm:$0xf]
  %v355 = vld [vmem:[%s3 + $0x40] sm:$0xf]
  %v356 = vld [vmem:[%s3 + $0x44] sm:$0xf]
  %v357 = vld [vmem:[%s3 + $0x48] sm:$0xf]
  %v358 = vld [vmem:[%s3 + $0x4c] sm:$0xf]
  %v359 = vld [vmem:[%s3 + $0x50] sm:$0xf]
  %v360 = vld [vmem:[%s3 + $0x54] sm:$0xf]
  %v361 = vld [vmem:[%s3 + $0x58] sm:$0xf]
  %v362 = vld [vmem:[%s3 + $0x5c] sm:$0xf]
  %v363 = vld [vmem:[%s3 + $0x60] sm:$0xf]
  %v364 = vld [vmem:[%s3 + $0x64] sm:$0xf]
  %v365 = vld [vmem:[%s3 + $0x68] sm:$0xf]
  %v366 = vld [vmem:[%s3 + $0x6c] sm:$0xf]
  %v367 = vld [vmem:[%s3 + $0x70] sm:$0xf]
  %v368 = vld [vmem:[%s3 + $0x74] sm:$0xf]
  %v369 = vld [vmem:[%s3 + $0x78] sm:$0xf]
  %v370 = vld [vmem:[%s3 + $0x7c] sm:$0xf]
  %v371 = vld [vmem:[%s4] sm:$0x1]
  %v373 = vperm.slane %v371, 0
  %v407 = vunpack.c.l.b16 %v339
  %v408 = vunpack.c.l.b16 %v340
  %v409 = vunpack.c.l.b16 %v341
  %v410 = vunpack.c.l.b16 %v342
  %v411 = vunpack.c.l.b16 %v343
  %v412 = vunpack.c.l.b16 %v344
  %v413 = vunpack.c.l.b16 %v345
  %v414 = vunpack.c.l.b16 %v346
  %v415 = vunpack.c.l.b16 %v347
  %v416 = vunpack.c.l.b16 %v348
  %v417 = vunpack.c.l.b16 %v349
  %v418 = vunpack.c.l.b16 %v350
  %v419 = vunpack.c.l.b16 %v351
  %v420 = vunpack.c.l.b16 %v352
  %v421 = vunpack.c.l.b16 %v353
  %v422 = vunpack.c.l.b16 %v354
  %v423 = vunpack.c.l.b16 %v355
  %v424 = vunpack.c.l.b16 %v356
  %v425 = vunpack.c.l.b16 %v357
  %v426 = vunpack.c.l.b16 %v358
  %v427 = vunpack.c.l.b16 %v359
  %v428 = vunpack.c.l.b16 %v360
  %v429 = vunpack.c.l.b16 %v361
  %v430 = vunpack.c.l.b16 %v362
  %v431 = vunpack.c.l.b16 %v363
  %v432 = vunpack.c.l.b16 %v364
  %v433 = vunpack.c.l.b16 %v365
  %v434 = vunpack.c.l.b16 %v366
  %v435 = vunpack.c.l.b16 %v367
  %v436 = vunpack.c.l.b16 %v368
  %v437 = vunpack.c.l.b16 %v369
  %v438 = vunpack.c.l.b16 %v370
  %v439 = vpack.c.b16 %v408, %v407
  %v440 = vpack.c.b16 %v410, %v409
  %v441 = vpack.c.b16 %v412, %v411
  %v442 = vpack.c.b16 %v414, %v413
  %v443 = vpack.c.b16 %v416, %v415
  %v444 = vpack.c.b16 %v418, %v417
  %v445 = vpack.c.b16 %v420, %v419
  %v446 = vpack.c.b16 %v422, %v421
  %v447 = vpack.c.b16 %v424, %v423
  %v448 = vpack.c.b16 %v426, %v425
  %v449 = vpack.c.b16 %v428, %v427
  %v450 = vpack.c.b16 %v430, %v429
  %v451 = vpack.c.b16 %v432, %v431
  %v452 = vpack.c.b16 %v434, %v433
  %v453 = vpack.c.b16 %v436, %v435
  %v454 = vpack.c.b16 %v438, %v437
  %471 = vmatpush.bf16.msra.mxu0 %v446
  %472 = vmatpush.bf16.msra.mxu0 %v445
  %473 = vmatpush.bf16.msra.mxu0 %v444
  %474 = vmatpush.bf16.msra.mxu0 %v443
  %475 = vmatpush.bf16.msra.mxu0 %v442
  %476 = vmatpush.bf16.msra.mxu0 %v441
  %477 = vmatpush.bf16.msra.mxu0 %v440
  %478 = vmatpush.bf16.msra.mxu0 %v439
  %479 = vmatmul.bf16.gmra.mxu0 %v275
  %v480 = vpop.f32.mrf.mxu0
  %v481 = vadd.f32 %v373, %v480
  %v482 = vpop.f32.mrf.mxu0
  %v483 = vadd.f32 %v373, %v482
  %484 = vmatmul.bf16.gmra.mxu0 %v276
  %v485 = vpop.f32.mrf.mxu0
  %v486 = vadd.f32 %v373, %v485
  %v487 = vpop.f32.mrf.mxu0
  %v488 = vadd.f32 %v373, %v487
  %489 = vmatmul.bf16.gmra.mxu0 %v277
  %v490 = vpop.f32.mrf.mxu0
  %v491 = vadd.f32 %v373, %v490
  %v492 = vpop.f32.mrf.mxu0
  %v493 = vadd.f32 %v373, %v492
  %494 = vmatmul.bf16.gmra.mxu0 %v278
  %v495 = vpop.f32.mrf.mxu0
  %v496 = vadd.f32 %v373, %v495
  %v497 = vpop.f32.mrf.mxu0
  %v498 = vadd.f32 %v373, %v497
  %499 = vmatmul.bf16.gmra.mxu0 %v279
  %v500 = vpop.f32.mrf.mxu0
  %v501 = vadd.f32 %v373, %v500
  %v502 = vpop.f32.mrf.mxu0
  %v503 = vadd.f32 %v373, %v502
  %504 = vmatmul.bf16.gmra.mxu0 %v280
  %v505 = vpop.f32.mrf.mxu0
  %v506 = vadd.f32 %v373, %v505
  %v507 = vpop.f32.mrf.mxu0
  %v508 = vadd.f32 %v373, %v507
  %509 = vmatmul.bf16.gmra.mxu0 %v281
  %v510 = vpop.f32.mrf.mxu0
  %v511 = vadd.f32 %v373, %v510
  %v512 = vpop.f32.mrf.mxu0
  %v513 = vadd.f32 %v373, %v512
  %514 = vmatmul.bf16.gmra.mxu0 %v282
  %v515 = vpop.f32.mrf.mxu0
  %v516 = vadd.f32 %v373, %v515
  %v517 = vpop.f32.mrf.mxu0
  %v518 = vadd.f32 %v373, %v517
  %519 = vdwg.mxu0
  %520 = vmatpush.bf16.msra.mxu0 %v454
  %521 = vmatpush.bf16.msra.mxu0 %v453
  %522 = vmatpush.bf16.msra.mxu0 %v452
  %523 = vmatpush.bf16.msra.mxu0 %v451
  %524 = vmatpush.bf16.msra.mxu0 %v450
  %525 = vmatpush.bf16.msra.mxu0 %v449
  %526 = vmatpush.bf16.msra.mxu0 %v448
  %527 = vmatpush.bf16.msra.mxu0 %v447
  %528 = vmatmul.bf16.gmra.mxu0 %v323
  %v529 = vpop.f32.mrf.mxu0
  %v530 = vadd.f32 %v481, %v529
  %v531 = vpop.f32.mrf.mxu0
  %v532 = vadd.f32 %v483, %v531
  %533 = vmatmul.bf16.gmra.mxu0 %v324
  %v534 = vpop.f32.mrf.mxu0
  %v535 = vadd.f32 %v486, %v534
  %v536 = vpop.f32.mrf.mxu0
  %v537 = vadd.f32 %v488, %v536
  %538 = vmatmul.bf16.gmra.mxu0 %v325
  %v539 = vpop.f32.mrf.mxu0
  %v540 = vadd.f32 %v491, %v539
  %v541 = vpop.f32.mrf.mxu0
  %v542 = vadd.f32 %v493, %v541
  %543 = vmatmul.bf16.gmra.mxu0 %v326
  %v544 = vpop.f32.mrf.mxu0
  %v545 = vadd.f32 %v496, %v544
  %v546 = vpop.f32.mrf.mxu0
  %v547 = vadd.f32 %v498, %v546
  %548 = vmatmul.bf16.gmra.mxu0 %v327
  %v549 = vpop.f32.mrf.mxu0
  %v550 = vadd.f32 %v501, %v549
  %v551 = vpop.f32.mrf.mxu0
  %v552 = vadd.f32 %v503, %v551
  %553 = vmatmul.bf16.gmra.mxu0 %v328
  %v554 = vpop.f32.mrf.mxu0
  %v555 = vadd.f32 %v506, %v554
  %v556 = vpop.f32.mrf.mxu0
  %v557 = vadd.f32 %v508, %v556
  %558 = vmatmul.bf16.gmra.mxu0 %v329
  %v559 = vpop.f32.mrf.mxu0
  %v560 = vadd.f32 %v511, %v559
  %v561 = vpop.f32.mrf.mxu0
  %v562 = vadd.f32 %v513, %v561
  %563 = vmatmul.bf16.gmra.mxu0 %v330
  %v564 = vpop.f32.mrf.mxu0
  %v565 = vadd.f32 %v516, %v564
  %v566 = vpop.f32.mrf.mxu0
  %v567 = vadd.f32 %v518, %v566
  %568 = vdwg.mxu0
  %569 = vst [vmem:[%s9] sm:$0xff] %v530
  %570 = vst [vmem:[%s9 + $0x8] sm:$0xff] %v532
  %571 = vst [vmem:[%s9 + $0x10] sm:$0xff] %v535
  %572 = vst [vmem:[%s9 + $0x18] sm:$0xff] %v537
  %573 = vst [vmem:[%s9 + $0x20] sm:$0xff] %v540
  %574 = vst [vmem:[%s9 + $0x28] sm:$0xff] %v542
  %575 = vst [vmem:[%s9 + $0x30] sm:$0xff] %v545
  %576 = vst [vmem:[%s9 + $0x38] sm:$0xff] %v547
  %577 = vst [vmem:[%s9 + $0x40] sm:$0xff] %v550
  %578 = vst [vmem:[%s9 + $0x48] sm:$0xff] %v552
  %579 = vst [vmem:[%s9 + $0x50] sm:$0xff] %v555
  %580 = vst [vmem:[%s9 + $0x58] sm:$0xff] %v557
  %581 = vst [vmem:[%s9 + $0x60] sm:$0xff] %v560
  %582 = vst [vmem:[%s9 + $0x68] sm:$0xff] %v562
  %583 = vst [vmem:[%s9 + $0x70] sm:$0xff] %v565
  %584 = vst [vmem:[%s9 + $0x78] sm:$0xff] %v567
  %v585 = vpack.c.bf16 %v532, %v530
  %v586 = vpack.c.bf16 %v537, %v535
  %v587 = vpack.c.bf16 %v542, %v540
  %v588 = vpack.c.bf16 %v547, %v545
  %v589 = vpack.c.bf16 %v552, %v550
  %v590 = vpack.c.bf16 %v557, %v555
  %v591 = vpack.c.bf16 %v562, %v560
  %v592 = vpack.c.bf16 %v567, %v565
  %v593 = vld [vmem:[%s5] sm:$0xf]
  %v594 = vld [vmem:[%s5 + $0x4] sm:$0xf]
  %v595 = vld [vmem:[%s5 + $0x8] sm:$0xf]
  %v596 = vld [vmem:[%s5 + $0xc] sm:$0xf]
  %v597 = vld [vmem:[%s5 + $0x10] sm:$0xf]
  %v598 = vld [vmem:[%s5 + $0x14] sm:$0xf]
  %v599 = vld [vmem:[%s5 + $0x18] sm:$0xf]
  %v600 = vld [vmem:[%s5 + $0x1c] sm:$0xf]
  %v601 = vld [vmem:[%s5 + $0x20] sm:$0xf]
  %v602 = vld [vmem:[%s5 + $0x24] sm:$0xf]
  %v603 = vld [vmem:[%s5 + $0x28] sm:$0xf]
  %v604 = vld [vmem:[%s5 + $0x2c] sm:$0xf]
  %v605 = vld [vmem:[%s5 + $0x30] sm:$0xf]
  %v606 = vld [vmem:[%s5 + $0x34] sm:$0xf]
  %v607 = vld [vmem:[%s5 + $0x38] sm:$0xf]
  %v608 = vld [vmem:[%s5 + $0x3c] sm:$0xf]
  %v609 = vld [vmem:[%s6] sm:$0x1]
  %v611 = vperm.slane %v609, 0
  %v629 = vunpack.c.l.b16 %v593
  %v630 = vunpack.c.l.b16 %v594
  %v631 = vunpack.c.l.b16 %v595
  %v632 = vunpack.c.l.b16 %v596
  %v633 = vunpack.c.l.b16 %v597
  %v634 = vunpack.c.l.b16 %v598
  %v635 = vunpack.c.l.b16 %v599
  %v636 = vunpack.c.l.b16 %v600
  %v637 = vunpack.c.l.b16 %v601
  %v638 = vunpack.c.l.b16 %v602
  %v639 = vunpack.c.l.b16 %v603
  %v640 = vunpack.c.l.b16 %v604
  %v641 = vunpack.c.l.b16 %v605
  %v642 = vunpack.c.l.b16 %v606
  %v643 = vunpack.c.l.b16 %v607
  %v644 = vunpack.c.l.b16 %v608
  %v645 = vpack.c.b16 %v630, %v629
  %v646 = vpack.c.b16 %v632, %v631
  %v647 = vpack.c.b16 %v634, %v633
  %v648 = vpack.c.b16 %v636, %v635
  %v649 = vpack.c.b16 %v638, %v637
  %v650 = vpack.c.b16 %v640, %v639
  %v651 = vpack.c.b16 %v642, %v641
  %v652 = vpack.c.b16 %v644, %v643
  %661 = vmatpush.bf16.msra.mxu0 %v652
  %662 = vmatpush.bf16.msra.mxu0 %v651
  %663 = vmatpush.bf16.msra.mxu0 %v650
  %664 = vmatpush.bf16.msra.mxu0 %v649
  %665 = vmatpush.bf16.msra.mxu0 %v648
  %666 = vmatpush.bf16.msra.mxu0 %v647
  %667 = vmatpush.bf16.msra.mxu0 %v646
  %668 = vmatpush.bf16.msra.mxu0 %v645
  %669 = vmatmul.bf16.gmra.mxu0 %v585
  %v670 = vpop.f32.mrf.mxu0
  %v671 = vadd.f32 %v611, %v670
  %v672 = vpop.f32.mrf.mxu0
  %v673 = vadd.f32 %v611, %v672
  %674 = vmatmul.bf16.gmra.mxu0 %v586
  %v675 = vpop.f32.mrf.mxu0
  %v676 = vadd.f32 %v611, %v675
  %v677 = vpop.f32.mrf.mxu0
  %v678 = vadd.f32 %v611, %v677
  %679 = vmatmul.bf16.gmra.mxu0 %v587
  %v680 = vpop.f32.mrf.mxu0
  %v681 = vadd.f32 %v611, %v680
  %v682 = vpop.f32.mrf.mxu0
  %v683 = vadd.f32 %v611, %v682
  %684 = vmatmul.bf16.gmra.mxu0 %v588
  %v685 = vpop.f32.mrf.mxu0
  %v686 = vadd.f32 %v611, %v685
  %v687 = vpop.f32.mrf.mxu0
  %v688 = vadd.f32 %v611, %v687
  %689 = vmatmul.bf16.gmra.mxu0 %v589
  %v690 = vpop.f32.mrf.mxu0
  %v691 = vadd.f32 %v611, %v690
  %v692 = vpop.f32.mrf.mxu0
  %v693 = vadd.f32 %v611, %v692
  %694 = vmatmul.bf16.gmra.mxu0 %v590
  %v695 = vpop.f32.mrf.mxu0
  %v696 = vadd.f32 %v611, %v695
  %v697 = vpop.f32.mrf.mxu0
  %v698 = vadd.f32 %v611, %v697
  %699 = vmatmul.bf16.gmra.mxu0 %v591
  %v700 = vpop.f32.mrf.mxu0
  %v701 = vadd.f32 %v611, %v700
  %v702 = vpop.f32.mrf.mxu0
  %v703 = vadd.f32 %v611, %v702
  %704 = vmatmul.bf16.gmra.mxu0 %v592
  %v705 = vpop.f32.mrf.mxu0
  %v706 = vadd.f32 %v611, %v705
  %v707 = vpop.f32.mrf.mxu0
  %v708 = vadd.f32 %v611, %v707
  %709 = vdwg.mxu0
  %v710 = vmax.f32 %v671, 0.0
  %v711 = vmax.f32 %v673, 0.0
  %v712 = vmax.f32 %v676, 0.0
  %v713 = vmax.f32 %v678, 0.0
  %v714 = vmax.f32 %v681, 0.0
  %v715 = vmax.f32 %v683, 0.0
  %v716 = vmax.f32 %v686, 0.0
  %v717 = vmax.f32 %v688, 0.0
  %v718 = vmax.f32 %v691, 0.0
  %v719 = vmax.f32 %v693, 0.0
  %v720 = vmax.f32 %v696, 0.0
  %v721 = vmax.f32 %v698, 0.0
  %v722 = vmax.f32 %v701, 0.0
  %v723 = vmax.f32 %v703, 0.0
  %v724 = vmax.f32 %v706, 0.0
  %v725 = vmax.f32 %v708, 0.0
  %v726 = vpack.c.bf16 %v711, %v710
  %v727 = vpack.c.bf16 %v713, %v712
  %v728 = vpack.c.bf16 %v715, %v714
  %v729 = vpack.c.bf16 %v717, %v716
  %v730 = vpack.c.bf16 %v719, %v718
  %v731 = vpack.c.bf16 %v721, %v720
  %v732 = vpack.c.bf16 %v723, %v722
  %v733 = vpack.c.bf16 %v725, %v724
  %v734 = vld [vmem:[%s7] sm:$0xf]
  %v735 = vld [vmem:[%s7 + $0x4] sm:$0xf]
  %v736 = vld [vmem:[%s7 + $0x8] sm:$0xf]
  %v737 = vld [vmem:[%s7 + $0xc] sm:$0xf]
  %v738 = vld [vmem:[%s7 + $0x10] sm:$0xf]
  %v739 = vld [vmem:[%s7 + $0x14] sm:$0xf]
  %v740 = vld [vmem:[%s7 + $0x18] sm:$0xf]
  %v741 = vld [vmem:[%s7 + $0x1c] sm:$0xf]
  %v742 = vld [vmem:[%s7 + $0x20] sm:$0xf]
  %v743 = vld [vmem:[%s7 + $0x24] sm:$0xf]
  %v744 = vld [vmem:[%s7 + $0x28] sm:$0xf]
  %v745 = vld [vmem:[%s7 + $0x2c] sm:$0xf]
  %v746 = vld [vmem:[%s7 + $0x30] sm:$0xf]
  %v747 = vld [vmem:[%s7 + $0x34] sm:$0xf]
  %v748 = vld [vmem:[%s7 + $0x38] sm:$0xf]
  %v749 = vld [vmem:[%s7 + $0x3c] sm:$0xf]
  %v750 = vld [vmem:[%s8] sm:$0x1]
  %v752 = vperm.slane %v750, 0
  %v770 = vunpack.c.l.b16 %v734
  %v771 = vunpack.c.l.b16 %v735
  %v772 = vunpack.c.l.b16 %v736
  %v773 = vunpack.c.l.b16 %v737
  %v774 = vunpack.c.l.b16 %v738
  %v775 = vunpack.c.l.b16 %v739
  %v776 = vunpack.c.l.b16 %v740
  %v777 = vunpack.c.l.b16 %v741
  %v778 = vunpack.c.l.b16 %v742
  %v779 = vunpack.c.l.b16 %v743
  %v780 = vunpack.c.l.b16 %v744
  %v781 = vunpack.c.l.b16 %v745
  %v782 = vunpack.c.l.b16 %v746
  %v783 = vunpack.c.l.b16 %v747
  %v784 = vunpack.c.l.b16 %v748
  %v785 = vunpack.c.l.b16 %v749
  %v786 = vpack.c.b16 %v771, %v770
  %v787 = vpack.c.b16 %v773, %v772
  %v788 = vpack.c.b16 %v775, %v774
  %v789 = vpack.c.b16 %v777, %v776
  %v790 = vpack.c.b16 %v779, %v778
  %v791 = vpack.c.b16 %v781, %v780
  %v792 = vpack.c.b16 %v783, %v782
  %v793 = vpack.c.b16 %v785, %v784
  %802 = vmatpush.bf16.msra.mxu0 %v793
  %803 = vmatpush.bf16.msra.mxu0 %v792
  %804 = vmatpush.bf16.msra.mxu0 %v791
  %805 = vmatpush.bf16.msra.mxu0 %v790
  %806 = vmatpush.bf16.msra.mxu0 %v789
  %807 = vmatpush.bf16.msra.mxu0 %v788
  %808 = vmatpush.bf16.msra.mxu0 %v787
  %809 = vmatpush.bf16.msra.mxu0 %v786
  %810 = vmatmul.bf16.gmra.mxu0 %v726
  %v811 = vpop.f32.mrf.mxu0
  %v812 = vadd.f32 %v752, %v811
  %v813 = vpop.f32.mrf.mxu0
  %v814 = vadd.f32 %v752, %v813
  %815 = vmatmul.bf16.gmra.mxu0 %v727
  %v816 = vpop.f32.mrf.mxu0
  %v817 = vadd.f32 %v752, %v816
  %v818 = vpop.f32.mrf.mxu0
  %v819 = vadd.f32 %v752, %v818
  %820 = vmatmul.bf16.gmra.mxu0 %v728
  %v821 = vpop.f32.mrf.mxu0
  %v822 = vadd.f32 %v752, %v821
  %v823 = vpop.f32.mrf.mxu0
  %v824 = vadd.f32 %v752, %v823
  %825 = vmatmul.bf16.gmra.mxu0 %v729
  %v826 = vpop.f32.mrf.mxu0
  %v827 = vadd.f32 %v752, %v826
  %v828 = vpop.f32.mrf.mxu0
  %v829 = vadd.f32 %v752, %v828
  %830 = vmatmul.bf16.gmra.mxu0 %v730
  %v831 = vpop.f32.mrf.mxu0
  %v832 = vadd.f32 %v752, %v831
  %v833 = vpop.f32.mrf.mxu0
  %v834 = vadd.f32 %v752, %v833
  %835 = vmatmul.bf16.gmra.mxu0 %v731
  %v836 = vpop.f32.mrf.mxu0
  %v837 = vadd.f32 %v752, %v836
  %v838 = vpop.f32.mrf.mxu0
  %v839 = vadd.f32 %v752, %v838
  %840 = vmatmul.bf16.gmra.mxu0 %v732
  %v841 = vpop.f32.mrf.mxu0
  %v842 = vadd.f32 %v752, %v841
  %v843 = vpop.f32.mrf.mxu0
  %v844 = vadd.f32 %v752, %v843
  %845 = vmatmul.bf16.gmra.mxu0 %v733
  %v846 = vpop.f32.mrf.mxu0
  %v847 = vadd.f32 %v752, %v846
  %v848 = vpop.f32.mrf.mxu0
  %v849 = vadd.f32 %v752, %v848
  %850 = vdwg.mxu0
  %851 = vst [vmem:[%s10] sm:$0xff] %v812
  %852 = vst [vmem:[%s10 + $0x8] sm:$0xff] %v814
  %853 = vst [vmem:[%s10 + $0x10] sm:$0xff] %v817
  %854 = vst [vmem:[%s10 + $0x18] sm:$0xff] %v819
  %855 = vst [vmem:[%s10 + $0x20] sm:$0xff] %v822
  %856 = vst [vmem:[%s10 + $0x28] sm:$0xff] %v824
  %857 = vst [vmem:[%s10 + $0x30] sm:$0xff] %v827
  %858 = vst [vmem:[%s10 + $0x38] sm:$0xff] %v829
  %859 = vst [vmem:[%s10 + $0x40] sm:$0xff] %v832
  %860 = vst [vmem:[%s10 + $0x48] sm:$0xff] %v834
  %861 = vst [vmem:[%s10 + $0x50] sm:$0xff] %v837
  %862 = vst [vmem:[%s10 + $0x58] sm:$0xff] %v839
  %863 = vst [vmem:[%s10 + $0x60] sm:$0xff] %v842
  %864 = vst [vmem:[%s10 + $0x68] sm:$0xff] %v844
  %865 = vst [vmem:[%s10 + $0x70] sm:$0xff] %v847
  %866 = vst [vmem:[%s10 + $0x78] sm:$0xff] %v849
  // Predicated region
  $region38: #{graphsage_forward.3} parent=0 // pred_check
    _
  $region39: #{graphsage_forward.3} parent=0 // pred_check_branch
    %868 = sbr.rel (0) target = $region41
  $region40: #{graphsage_forward.3} parent=0 // pred_region
    _
  $region41: #{graphsage_forward.3} parent=0 // pred_fallthru
    _
  // Predicated region
  $region42: #{graphsage_forward.3} parent=0 // pred_check
    _
  $region43: #{graphsage_forward.3} parent=0 // pred_check_branch
    %870 = sbr.rel (0) target = $region45
  $region44: #{graphsage_forward.3} parent=0 // pred_region
    _
  $region45: #{graphsage_forward.3} parent=0 // pred_fallthru
    _
  // Predicated region
  $region46: #{graphsage_forward.3} parent=0 // pred_check
    _
  $region47: #{graphsage_forward.3} parent=0 // pred_check_branch
    %872 = sbr.rel (0) target = $region49
  $region48: #{graphsage_forward.3} parent=0 // pred_region
    _
  $region49: #{graphsage_forward.3} parent=0 // pred_fallthru
    _
  // Predicated region
  $region50: #{graphsage_forward.3} parent=0 // pred_check
    _
  $region51: #{graphsage_forward.3} parent=0 // pred_check_branch
    %874 = sbr.rel (0) target = $region53
  $region52: #{graphsage_forward.3} parent=0 // pred_region
    _
  $region53: #{graphsage_forward.3} parent=0 // pred_fallthru
    _

</llo_original>
